<compile_context>
chip_gen: v7x
topology: tpu7x:2x2x1
jax: 0.10.0
libtpu: 0.0.40
codegen_flags: <defaults>
</compile_context>

<pallas_src>
import numpy as np
import jax
import jax.numpy as jnp
from jax.experimental import pallas as pl
from jax.experimental.pallas import tpu as pltpu


# ----------------------------------------------------------------------------
# Static TPS machinery (mirrors TpsGridGen.__init__ / compute_L_inverse)
# ----------------------------------------------------------------------------
def build_tps_constants(out_h, out_w, grid_size):
    grid_X, grid_Y = np.meshgrid(
        np.linspace(-1.0, 1.0, out_w), np.linspace(-1.0, 1.0, out_h)
    )
    grid_X = grid_X.astype(np.float32)
    grid_Y = grid_Y.astype(np.float32)

    axis_coords = np.linspace(-1.0, 1.0, grid_size)
    P_Y, P_X = np.meshgrid(axis_coords, axis_coords)
    P_X = P_X.reshape(-1).astype(np.float32)
    P_Y = P_Y.reshape(-1).astype(np.float32)
    N = grid_size * grid_size

    Xm = np.broadcast_to(P_X[:, None], (N, N))
    Ym = np.broadcast_to(P_Y[:, None], (N, N))
    d2 = (Xm - Xm.T) ** 2 + (Ym - Ym.T) ** 2
    d2 = np.where(d2 == 0.0, 1.0, d2)
    K = d2 * np.log(d2)
    P = np.concatenate([np.ones((N, 1)), P_X[:, None], P_Y[:, None]], axis=1)
    L = np.zeros((N + 3, N + 3), dtype=np.float64)
    L[:N, :N] = K
    L[:N, N:] = P
    L[N:, :N] = P.T
    # TODO(synk): torch.inverse equivalent done host-side in numpy (static, tiny 12x12).
    Li = np.linalg.inv(L).astype(np.float32)
    return grid_X, grid_Y, P_X, P_Y, Li, N


# ----------------------------------------------------------------------------
# Tiling helpers
# ----------------------------------------------------------------------------
def _round_up(x, m):
    return ((x + m - 1) // m) * m


def _cdiv(a, b):
    return -(-a // b)


def _vmem_capacity_bytes():
    try:
        info = pltpu.get_tpu_info()
        cap = getattr(info, "vmem_capacity_bytes", None)
        if cap:
            return int(cap)
    except Exception:
        pass
    return 64 * 1024 * 1024  # conservative fallback (v7x per-TC VMEM)


def _choose_tile_h(out_h, w_pad, n_ctrl, b_blk, vmem_cap):
    # Live VMEM rows per tile row:
    #   basis cache (n_ctrl + 2) + double-buffered output block (2*2*b_blk)
    #   + live accumulators (2*b_blk)   ->   (n_ctrl + 2 + 6*b_blk) rows.
    h8 = _round_up(out_h, 8)
    budget = int(0.6 * vmem_cap)
    per_row = (n_ctrl + 2 + 6 * b_blk) * w_pad * 4
    th = max(8, (budget // per_row) // 8 * 8)
    th = min(th, 2048)           # big steps: amortize ~0.35us fixed per-step cost
    th = min(th, h8)

    # v7x has 2 TensorCores: make sure the leading "parallel" h axis has work
    # for both (>= 2 tiles, >= 4 for tall images).  No-op on tiny images.
    if h8 >= 512:
        n_h_min = 4
    elif h8 >= 128:
        n_h_min = 2
    else:
        n_h_min = 1
    if n_h_min > 1:
        th = min(th, _round_up(_cdiv(h8, n_h_min), 8))
    return max(8, th)


# ----------------------------------------------------------------------------
# Pallas kernel: batch-blocked per-pixel TPS evaluation with batch-invariant
# radial-basis cache
# ----------------------------------------------------------------------------
def make_tps_kernel(px_const, py_const, n_ctrl, b_blk, tile_h, w_pad, y_step, x_step):
    px_const = [float(v) for v in px_const]
    py_const = [float(v) for v in py_const]
    y_step = float(y_step)
    x_step = float(x_step)
    n_coef = n_ctrl + 3

    def tps_kernel(c_ref, o_ref, u_ref, gx_ref, gy_ref):
        h = pl.program_id(0)    # spatial tile index  (parallel, leading)
        bb = pl.program_id(1)   # batch-block index   (arbitrary, innermost)

        # Batch-invariant work: sampling grid + radial-basis maps, once per tile.
        # CORRECTNESS INVARIANT: relies on the batch axis being the innermost,
        # sequentially iterated ("arbitrary") axis so bb == 0 runs first for
        # every h on every core.  Do NOT mark the batch axis "parallel".
        @pl.when(bb == 0)
        def _():
            row_i = jax.lax.broadcasted_iota(jnp.int32, (tile_h, w_pad), 0) + h * tile_h
            col_i = jax.lax.broadcasted_iota(jnp.int32, (tile_h, w_pad), 1)
            x = col_i.astype(jnp.float32) * jnp.float32(x_step) - 1.0
            y = row_i.astype(jnp.float32) * jnp.float32(y_step) - 1.0
            gx_ref[...] = x
            gy_ref[...] = y
            for k in range(n_ctrl):
                dx = x - px_const[k]
                dy = y - py_const[k]
                d2 = dx * dx + dy * dy
                d2 = jnp.where(d2 == 0.0, jnp.float32(1.0), d2)
                u_ref[k] = d2 * jnp.log(d2)

        x = gx_ref[...]
        y = gy_ref[...]
        b0 = bb * b_blk

        # Coefficient layout (flat 1-D SMEM): ((b*2 + ch)*(N+3) + k),
        # per (batch, channel): [A0, A1, A2, W_0 .. W_{N-1}].
        accs = []
        for bl in range(b_blk):
            for ch in range(2):
                base = ((b0 + bl) * 2 + ch) * n_coef
                accs.append(c_ref[base + 0] + c_ref[base + 1] * x + c_ref[base + 2] * y)

        # k-contraction: each cached U_k slab is loaded once per grid step and
        # reused across the whole batch block (2*b_blk accumulators).
        for k in range(n_ctrl):
            u = u_ref[k]
            for bl in range(b_blk):
                for ch in range(2):
                    i = bl * 2 + ch
                    base = ((b0 + bl) * 2 + ch) * n_coef
                    accs[i] = accs[i] + c_ref[base + 3 + k] * u

        for bl in range(b_blk):
            for ch in range(2):
                o_ref[bl, ch] = accs[bl * 2 + ch].astype(o_ref.dtype)

    return tps_kernel


# ----------------------------------------------------------------------------
# Fast path: padded, lane-dense output, no post-kernel layout passes.
# Returns (B_pad, 2, h_pad, w_pad) float32; only [:B, :, :out_h, :out_w] is
# valid (rows/cols beyond out_h/out_w hold extrapolated TPS values, batches
# beyond B are zero).
# ----------------------------------------------------------------------------
def tps_grid_gen_padded(theta, *, out_h, out_w, grid_size=3):
    _, _, P_X, P_Y, Li, N = build_tps_constants(out_h, out_w, grid_size)
    assert theta.shape[1] == 2 * N
    B = theta.shape[0]
    NC = N + 3

    # --- glue: tiny per-batch TPS coefficient solves (not the hot path) ---
    hi = jax.lax.Precision.HIGHEST
    Li_j = jnp.asarray(Li)
    Q_X = theta[:, :N] + jnp.asarray(P_X)[None, :]                     # (B, N)
    Q_Y = theta[:, N:] + jnp.asarray(P_Y)[None, :]                     # (B, N)
    W_X = jnp.einsum("ij,bj->bi", Li_j[:N, :N], Q_X, precision=hi)     # (B, N)
    W_Y = jnp.einsum("ij,bj->bi", Li_j[:N, :N], Q_Y, precision=hi)     # (B, N)
    A_X = jnp.einsum("ij,bj->bi", Li_j[N:, :N], Q_X, precision=hi)     # (B, 3)
    A_Y = jnp.einsum("ij,bj->bi", Li_j[N:, :N], Q_Y, precision=hi)     # (B, 3)
    CX = jnp.concatenate([A_X, W_X], axis=1)                           # (B, N+3)
    CY = jnp.concatenate([A_Y, W_Y], axis=1)                           # (B, N+3)
    coef = jnp.stack([CX, CY], axis=1).astype(jnp.float32)             # (B, 2, N+3)

    # --- batch blocking ---
    b_blk = min(B, 8)
    B_pad = _round_up(B, b_blk)
    n_bb = B_pad // b_blk
    if B_pad > B:
        coef = jnp.pad(coef, ((0, B_pad - B), (0, 0), (0, 0)))
    coef_flat = coef.reshape(-1)      # flat 1-D SMEM table (no 128-word row padding)

    # --- spatial tiling ---
    w_pad = _round_up(out_w, 128)                 # lane-dense, unmasked stores
    vmem_cap = _vmem_capacity_bytes()
    tile_h = _choose_tile_h(out_h, w_pad, N, b_blk, vmem_cap)
    h_pad = _round_up(out_h, tile_h)
    n_h = h_pad // tile_h

    scratch_bytes = (N + 2) * tile_h * w_pad * 4
    out_block_bytes = 2 * (2 * b_blk) * tile_h * w_pad * 4   # double-buffered
    acc_bytes = (2 * b_blk) * tile_h * w_pad * 4             # live accumulators
    vmem_limit = int(min(0.95 * vmem_cap,
                         max(16 * 1024 * 1024,
                             1.5 * (scratch_bytes + out_block_bytes + acc_bytes)
                             + (4 << 20))))

    x_step = 2.0 / max(out_w - 1, 1)
    y_step = 2.0 / max(out_h - 1, 1)
    kernel = make_tps_kernel(P_X, P_Y, N, b_blk, tile_h, w_pad, y_step, x_step)

    cost = pl.CostEstimate(
        flops=int(B_pad * h_pad * w_pad * 2 * (NC + 2) + n_h * tile_h * w_pad * 6 * N),
        transcendentals=int(n_h * tile_h * w_pad * N),
        bytes_accessed=int(2 * B_pad * h_pad * w_pad * 4 + coef_flat.size * 4),
    )

    maps = pl.pallas_call(
        kernel,
        out_shape=jax.ShapeDtypeStruct((B_pad, 2, h_pad, w_pad), jnp.float32),
        grid=(n_h, n_bb),
        in_specs=[pl.BlockSpec(memory_space=pltpu.MemorySpace.SMEM)],
        out_specs=pl.BlockSpec((b_blk, 2, tile_h, w_pad), lambda h, bb: (bb, 0, h, 0)),
        scratch_shapes=[
            pltpu.VMEM((N, tile_h, w_pad), jnp.float32),   # cached U_k maps
            pltpu.VMEM((tile_h, w_pad), jnp.float32),      # cached grid x
            pltpu.VMEM((tile_h, w_pad), jnp.float32),      # cached grid y
        ],
        compiler_params=pltpu.CompilerParams(
            dimension_semantics=("parallel", "arbitrary"),
            vmem_limit_bytes=vmem_limit,
        ),
        cost_estimate=cost,
    )(coef_flat)
    return maps


# ----------------------------------------------------------------------------
# PyTorch-compatible wrapper: (B, H, W, 2), matching cat((X', Y'), dim=3).
# NOTE: the slice + transpose below are a pure layout pass (one extra HBM
# round-trip); throughput-sensitive consumers should call tps_grid_gen_padded()
# and read [:B, :, :out_h, :out_w] directly.
# ----------------------------------------------------------------------------
def tps_grid_gen(theta, *, out_h, out_w, grid_size=3):
    B = theta.shape[0]
    maps = tps_grid_gen_padded(theta, out_h=out_h, out_w=out_w, grid_size=grid_size)
    return jnp.transpose(maps[:B, :, :out_h, :out_w], (0, 2, 3, 1))


# ----------------------------------------------------------------------------
# Pure-numpy reference (mirrors apply_transformation)
# ----------------------------------------------------------------------------
def tps_reference(theta, out_h, out_w, grid_size=3):
    grid_X, grid_Y, P_X, P_Y, Li, N = build_tps_constants(out_h, out_w, grid_size)
    theta = np.asarray(theta, dtype=np.float32)
    Q_X = theta[:, :N] + P_X[None, :]
    Q_Y = theta[:, N:] + P_Y[None, :]
    W_X = Q_X @ Li[:N, :N].T
    W_Y = Q_Y @ Li[:N, :N].T
    A_X = Q_X @ Li[N:, :N].T
    A_Y = Q_Y @ Li[N:, :N].T

    dx = grid_X[:, :, None] - P_X[None, None, :]
    dy = grid_Y[:, :, None] - P_Y[None, None, :]
    d2 = dx * dx + dy * dy
    d2 = np.where(d2 == 0.0, 1.0, d2)
    U = d2 * np.log(d2)  # (H, W, N)

    xp = (A_X[:, 0, None, None]
          + A_X[:, 1, None, None] * grid_X[None]
          + A_X[:, 2, None, None] * grid_Y[None]
          + np.einsum("bk,hwk->bhw", W_X, U))
    yp = (A_Y[:, 0, None, None]
          + A_Y[:, 1, None, None] * grid_X[None]
          + A_Y[:, 2, None, None] * grid_Y[None]
          + np.einsum("bk,hwk->bhw", W_Y, U))
    return np.stack([xp, yp], axis=-1)


if __name__ == "__main__":
    B = 2
    GRID_SIZE = 3
    N = GRID_SIZE * GRID_SIZE
    OUT_H, OUT_W = 50, 96  # small, deliberately not (8,128)-aligned to exercise padding

    key = jax.random.PRNGKey(0)
    theta = 0.1 * jax.random.normal(key, (B, 2 * N), dtype=jnp.float32)

    # Fast padded path (documented API, no post-kernel layout passes).
    maps = tps_grid_gen_padded(theta, out_h=OUT_H, out_w=OUT_W, grid_size=GRID_SIZE)
    maps = jax.block_until_ready(maps)

    # PyTorch-layout path (matches the nn.Module forward output).
    out = tps_grid_gen(theta, out_h=OUT_H, out_w=OUT_W, grid_size=GRID_SIZE)
    out = jax.block_until_ready(out)

    ref = tps_reference(np.asarray(theta), OUT_H, OUT_W, GRID_SIZE)

    maps_np = np.asarray(maps)[:B, :, :OUT_H, :OUT_W]
    np.testing.assert_allclose(maps_np[:, 0], ref[..., 0], rtol=2e-4, atol=5e-5)
    np.testing.assert_allclose(maps_np[:, 1], ref[..., 1], rtol=2e-4, atol=5e-5)
    np.testing.assert_allclose(np.asarray(out), ref, rtol=2e-4, atol=5e-5)
    assert out.shape == (B, OUT_H, OUT_W, 2)
    print("KERNEL_OK")
</pallas_src>

<mosaic_0001>
module attributes {stable_mosaic.version = 11 : i64} {
  func.func @tps_kernel(%arg0: i32, %arg1: i32, %arg2: memref<48xf32, #tpu.memory_space<smem>>, %arg3: memref<2x2x56x128xf32, #tpu.memory_space<vmem>>, %arg4: memref<9x56x128xf32, #tpu.memory_space<vmem>>, %arg5: memref<56x128xf32, #tpu.memory_space<vmem>>, %arg6: memref<56x128xf32, #tpu.memory_space<vmem>>) attributes {dimension_semantics = [#tpu.dimension_semantics<parallel>, #tpu.dimension_semantics<arbitrary>], iteration_bounds = array<i64: 1, 1>, scalar_prefetch = 0 : i64, scratch_operands = 3 : i64, tpu.core_type = #tpu.core_type<tc>, window_params = [{transform_indices = @transform_0, window_bounds = array<i64: 48>}, {transform_indices = @transform_1, window_bounds = array<i64: 2, 2, 56, 128>}]} {
    %c0_i32 = arith.constant 0 : i32
    %0 = arith.cmpi eq, %arg1, %c0_i32 : i32
    %1 = arith.extui %0 : i1 to i32
    %c0_i32_0 = arith.constant 0 : i32
    %2 = arith.cmpi ne, %1, %c0_i32_0 : i32
    scf.if %2 {
      %512 = tpu.iota {dimensions = array<i32: 0>} : vector<56x128xi32>
      %c56_i32 = arith.constant 56 : i32
      %513 = arith.muli %arg0, %c56_i32 : i32
      %514 = vector.broadcast %513 : i32 to vector<56x128xi32>
      %515 = arith.addi %512, %514 : vector<56x128xi32>
      %516 = tpu.iota {dimensions = array<i32: 1>} : vector<56x128xi32>
      %517 = arith.sitofp %516 : vector<56x128xi32> to vector<56x128xf32>
      %cst = arith.constant 0.0210526325 : f32
      %518 = vector.broadcast %cst : f32 to vector<56x128xf32>
      %519 = arith.mulf %517, %518 : vector<56x128xf32>
      %cst_275 = arith.constant 1.000000e+00 : f32
      %520 = vector.broadcast %cst_275 : f32 to vector<56x128xf32>
      %521 = arith.subf %519, %520 : vector<56x128xf32>
      %522 = arith.sitofp %515 : vector<56x128xi32> to vector<56x128xf32>
      %cst_276 = arith.constant 0.0408163257 : f32
      %523 = vector.broadcast %cst_276 : f32 to vector<56x128xf32>
      %524 = arith.mulf %522, %523 : vector<56x128xf32>
      %cst_277 = arith.constant 1.000000e+00 : f32
      %525 = vector.broadcast %cst_277 : f32 to vector<56x128xf32>
      %526 = arith.subf %524, %525 : vector<56x128xf32>
      %c0_278 = arith.constant 0 : index
      %c0_279 = arith.constant 0 : index
      %527 = vector.load %arg5[%c0_278, %c0_279] : memref<56x128xf32, #tpu.memory_space<vmem>>, vector<56x128xf32>
      tpu.vector_store %arg5[%c0_278, %c0_279], %521 {strides = array<i32>} : memref<56x128xf32, #tpu.memory_space<vmem>>, vector<56x128xf32>,
      %c0_280 = arith.constant 0 : index
      %c0_281 = arith.constant 0 : index
      %528 = vector.load %arg6[%c0_280, %c0_281] : memref<56x128xf32, #tpu.memory_space<vmem>>, vector<56x128xf32>
      tpu.vector_store %arg6[%c0_280, %c0_281], %526 {strides = array<i32>} : memref<56x128xf32, #tpu.memory_space<vmem>>, vector<56x128xf32>,
      %cst_282 = arith.constant -1.000000e+00 : f32
      %529 = vector.broadcast %cst_282 : f32 to vector<56x128xf32>
      %530 = arith.subf %521, %529 : vector<56x128xf32>
      %cst_283 = arith.constant -1.000000e+00 : f32
      %531 = vector.broadcast %cst_283 : f32 to vector<56x128xf32>
      %532 = arith.subf %526, %531 : vector<56x128xf32>
      %533 = arith.mulf %530, %530 : vector<56x128xf32>
      %534 = arith.mulf %532, %532 : vector<56x128xf32>
      %535 = arith.addf %533, %534 : vector<56x128xf32>
      %cst_284 = arith.constant 0.000000e+00 : f32
      %536 = vector.broadcast %cst_284 : f32 to vector<56x128xf32>
      %537 = arith.cmpf oeq, %535, %536 : vector<56x128xf32>
      %cst_285 = arith.constant 1.000000e+00 : f32
      %538 = vector.broadcast %cst_285 : f32 to vector<56x128xf32>
      %539 = arith.select %537, %538, %535 : vector<56x128xi1>, vector<56x128xf32>
      %540 = math.log %539 : vector<56x128xf32>
      %541 = arith.mulf %539, %540 : vector<56x128xf32>
      %c0_286 = arith.constant 0 : index
      %c0_287 = arith.constant 0 : index
      %c0_288 = arith.constant 0 : index
      %542 = vector.load %arg4[%c0_286, %c0_287, %c0_288] : memref<9x56x128xf32, #tpu.memory_space<vmem>>, vector<1x56x128xf32>
      %543 = vector.shape_cast %542 : vector<1x56x128xf32> to vector<56x128xf32>
      %544 = vector.shape_cast %541 : vector<56x128xf32> to vector<1x56x128xf32>
      tpu.vector_store %arg4[%c0_286, %c0_287, %c0_288], %544 {strides = array<i32>} : memref<9x56x128xf32, #tpu.memory_space<vmem>>, vector<1x56x128xf32>,
      %cst_289 = arith.constant -1.000000e+00 : f32
      %545 = vector.broadcast %cst_289 : f32 to vector<56x128xf32>
      %546 = arith.subf %521, %545 : vector<56x128xf32>
      %cst_290 = arith.constant 0.000000e+00 : f32
      %547 = vector.broadcast %cst_290 : f32 to vector<56x128xf32>
      %548 = arith.subf %526, %547 : vector<56x128xf32>
      %549 = arith.mulf %546, %546 : vector<56x128xf32>
      %550 = arith.mulf %548, %548 : vector<56x128xf32>
      %551 = arith.addf %549, %550 : vector<56x128xf32>
      %cst_291 = arith.constant 0.000000e+00 : f32
      %552 = vector.broadcast %cst_291 : f32 to vector<56x128xf32>
      %553 = arith.cmpf oeq, %551, %552 : vector<56x128xf32>
      %cst_292 = arith.constant 1.000000e+00 : f32
      %554 = vector.broadcast %cst_292 : f32 to vector<56x128xf32>
      %555 = arith.select %553, %554, %551 : vector<56x128xi1>, vector<56x128xf32>
      %556 = math.log %555 : vector<56x128xf32>
      %557 = arith.mulf %555, %556 : vector<56x128xf32>
      %c1_293 = arith.constant 1 : index
      %c0_294 = arith.constant 0 : index
      %c0_295 = arith.constant 0 : index
      %558 = vector.load %arg4[%c1_293, %c0_294, %c0_295] : memref<9x56x128xf32, #tpu.memory_space<vmem>>, vector<1x56x128xf32>
      %559 = vector.shape_cast %558 : vector<1x56x128xf32> to vector<56x128xf32>
      %560 = vector.shape_cast %557 : vector<56x128xf32> to vector<1x56x128xf32>
      tpu.vector_store %arg4[%c1_293, %c0_294, %c0_295], %560 {strides = array<i32>} : memref<9x56x128xf32, #tpu.memory_space<vmem>>, vector<1x56x128xf32>,
      %cst_296 = arith.constant -1.000000e+00 : f32
      %561 = vector.broadcast %cst_296 : f32 to vector<56x128xf32>
      %562 = arith.subf %521, %561 : vector<56x128xf32>
      %cst_297 = arith.constant 1.000000e+00 : f32
      %563 = vector.broadcast %cst_297 : f32 to vector<56x128xf32>
      %564 = arith.subf %526, %563 : vector<56x128xf32>
      %565 = arith.mulf %562, %562 : vector<56x128xf32>
      %566 = arith.mulf %564, %564 : vector<56x128xf32>
      %567 = arith.addf %565, %566 : vector<56x128xf32>
      %cst_298 = arith.constant 0.000000e+00 : f32
      %568 = vector.broadcast %cst_298 : f32 to vector<56x128xf32>
      %569 = arith.cmpf oeq, %567, %568 : vector<56x128xf32>
      %cst_299 = arith.constant 1.000000e+00 : f32
      %570 = vector.broadcast %cst_299 : f32 to vector<56x128xf32>
      %571 = arith.select %569, %570, %567 : vector<56x128xi1>, vector<56x128xf32>
      %572 = math.log %571 : vector<56x128xf32>
      %573 = arith.mulf %571, %572 : vector<56x128xf32>
      %c2_300 = arith.constant 2 : index
      %c0_301 = arith.constant 0 : index
      %c0_302 = arith.constant 0 : index
      %574 = vector.load %arg4[%c2_300, %c0_301, %c0_302] : memref<9x56x128xf32, #tpu.memory_space<vmem>>, vector<1x56x128xf32>
      %575 = vector.shape_cast %574 : vector<1x56x128xf32> to vector<56x128xf32>
      %576 = vector.shape_cast %573 : vector<56x128xf32> to vector<1x56x128xf32>
      tpu.vector_store %arg4[%c2_300, %c0_301, %c0_302], %576 {strides = array<i32>} : memref<9x56x128xf32, #tpu.memory_space<vmem>>, vector<1x56x128xf32>,
      %cst_303 = arith.constant 0.000000e+00 : f32
      %577 = vector.broadcast %cst_303 : f32 to vector<56x128xf32>
      %578 = arith.subf %521, %577 : vector<56x128xf32>
      %cst_304 = arith.constant -1.000000e+00 : f32
      %579 = vector.broadcast %cst_304 : f32 to vector<56x128xf32>
      %580 = arith.subf %526, %579 : vector<56x128xf32>
      %581 = arith.mulf %578, %578 : vector<56x128xf32>
      %582 = arith.mulf %580, %580 : vector<56x128xf32>
      %583 = arith.addf %581, %582 : vector<56x128xf32>
      %cst_305 = arith.constant 0.000000e+00 : f32
      %584 = vector.broadcast %cst_305 : f32 to vector<56x128xf32>
      %585 = arith.cmpf oeq, %583, %584 : vector<56x128xf32>
      %cst_306 = arith.constant 1.000000e+00 : f32
      %586 = vector.broadcast %cst_306 : f32 to vector<56x128xf32>
      %587 = arith.select %585, %586, %583 : vector<56x128xi1>, vector<56x128xf32>
      %588 = math.log %587 : vector<56x128xf32>
      %589 = arith.mulf %587, %588 : vector<56x128xf32>
      %c3_307 = arith.constant 3 : index
      %c0_308 = arith.constant 0 : index
      %c0_309 = arith.constant 0 : index
      %590 = vector.load %arg4[%c3_307, %c0_308, %c0_309] : memref<9x56x128xf32, #tpu.memory_space<vmem>>, vector<1x56x128xf32>
      %591 = vector.shape_cast %590 : vector<1x56x128xf32> to vector<56x128xf32>
      %592 = vector.shape_cast %589 : vector<56x128xf32> to vector<1x56x128xf32>
      tpu.vector_store %arg4[%c3_307, %c0_308, %c0_309], %592 {strides = array<i32>} : memref<9x56x128xf32, #tpu.memory_space<vmem>>, vector<1x56x128xf32>,
      %cst_310 = arith.constant 0.000000e+00 : f32
      %593 = vector.broadcast %cst_310 : f32 to vector<56x128xf32>
      %594 = arith.subf %521, %593 : vector<56x128xf32>
      %cst_311 = arith.constant 0.000000e+00 : f32
      %595 = vector.broadcast %cst_311 : f32 to vector<56x128xf32>
      %596 = arith.subf %526, %595 : vector<56x128xf32>
      %597 = arith.mulf %594, %594 : vector<56x128xf32>
      %598 = arith.mulf %596, %596 : vector<56x128xf32>
      %599 = arith.addf %597, %598 : vector<56x128xf32>
      %cst_312 = arith.constant 0.000000e+00 : f32
      %600 = vector.broadcast %cst_312 : f32 to vector<56x128xf32>
      %601 = arith.cmpf oeq, %599, %600 : vector<56x128xf32>
      %cst_313 = arith.constant 1.000000e+00 : f32
      %602 = vector.broadcast %cst_313 : f32 to vector<56x128xf32>
      %603 = arith.select %601, %602, %599 : vector<56x128xi1>, vector<56x128xf32>
      %604 = math.log %603 : vector<56x128xf32>
      %605 = arith.mulf %603, %604 : vector<56x128xf32>
      %c4_314 = arith.constant 4 : index
      %c0_315 = arith.constant 0 : index
      %c0_316 = arith.constant 0 : index
      %606 = vector.load %arg4[%c4_314, %c0_315, %c0_316] : memref<9x56x128xf32, #tpu.memory_space<vmem>>, vector<1x56x128xf32>
      %607 = vector.shape_cast %606 : vector<1x56x128xf32> to vector<56x128xf32>
      %608 = vector.shape_cast %605 : vector<56x128xf32> to vector<1x56x128xf32>
      tpu.vector_store %arg4[%c4_314, %c0_315, %c0_316], %608 {strides = array<i32>} : memref<9x56x128xf32, #tpu.memory_space<vmem>>, vector<1x56x128xf32>,
      %cst_317 = arith.constant 0.000000e+00 : f32
      %609 = vector.broadcast %cst_317 : f32 to vector<56x128xf32>
      %610 = arith.subf %521, %609 : vector<56x128xf32>
      %cst_318 = arith.constant 1.000000e+00 : f32
      %611 = vector.broadcast %cst_318 : f32 to vector<56x128xf32>
      %612 = arith.subf %526, %611 : vector<56x128xf32>
      %613 = arith.mulf %610, %610 : vector<56x128xf32>
      %614 = arith.mulf %612, %612 : vector<56x128xf32>
      %615 = arith.addf %613, %614 : vector<56x128xf32>
      %cst_319 = arith.constant 0.000000e+00 : f32
      %616 = vector.broadcast %cst_319 : f32 to vector<56x128xf32>
      %617 = arith.cmpf oeq, %615, %616 : vector<56x128xf32>
      %cst_320 = arith.constant 1.000000e+00 : f32
      %618 = vector.broadcast %cst_320 : f32 to vector<56x128xf32>
      %619 = arith.select %617, %618, %615 : vector<56x128xi1>, vector<56x128xf32>
      %620 = math.log %619 : vector<56x128xf32>
      %621 = arith.mulf %619, %620 : vector<56x128xf32>
      %c5_321 = arith.constant 5 : index
      %c0_322 = arith.constant 0 : index
      %c0_323 = arith.constant 0 : index
      %622 = vector.load %arg4[%c5_321, %c0_322, %c0_323] : memref<9x56x128xf32, #tpu.memory_space<vmem>>, vector<1x56x128xf32>
      %623 = vector.shape_cast %622 : vector<1x56x128xf32> to vector<56x128xf32>
      %624 = vector.shape_cast %621 : vector<56x128xf32> to vector<1x56x128xf32>
      tpu.vector_store %arg4[%c5_321, %c0_322, %c0_323], %624 {strides = array<i32>} : memref<9x56x128xf32, #tpu.memory_space<vmem>>, vector<1x56x128xf32>,
      %cst_324 = arith.constant 1.000000e+00 : f32
      %625 = vector.broadcast %cst_324 : f32 to vector<56x128xf32>
      %626 = arith.subf %521, %625 : vector<56x128xf32>
      %cst_325 = arith.constant -1.000000e+00 : f32
      %627 = vector.broadcast %cst_325 : f32 to vector<56x128xf32>
      %628 = arith.subf %526, %627 : vector<56x128xf32>
      %629 = arith.mulf %626, %626 : vector<56x128xf32>
      %630 = arith.mulf %628, %628 : vector<56x128xf32>
      %631 = arith.addf %629, %630 : vector<56x128xf32>
      %cst_326 = arith.constant 0.000000e+00 : f32
      %632 = vector.broadcast %cst_326 : f32 to vector<56x128xf32>
      %633 = arith.cmpf oeq, %631, %632 : vector<56x128xf32>
      %cst_327 = arith.constant 1.000000e+00 : f32
      %634 = vector.broadcast %cst_327 : f32 to vector<56x128xf32>
      %635 = arith.select %633, %634, %631 : vector<56x128xi1>, vector<56x128xf32>
      %636 = math.log %635 : vector<56x128xf32>
      %637 = arith.mulf %635, %636 : vector<56x128xf32>
      %c6_328 = arith.constant 6 : index
      %c0_329 = arith.constant 0 : index
      %c0_330 = arith.constant 0 : index
      %638 = vector.load %arg4[%c6_328, %c0_329, %c0_330] : memref<9x56x128xf32, #tpu.memory_space<vmem>>, vector<1x56x128xf32>
      %639 = vector.shape_cast %638 : vector<1x56x128xf32> to vector<56x128xf32>
      %640 = vector.shape_cast %637 : vector<56x128xf32> to vector<1x56x128xf32>
      tpu.vector_store %arg4[%c6_328, %c0_329, %c0_330], %640 {strides = array<i32>} : memref<9x56x128xf32, #tpu.memory_space<vmem>>, vector<1x56x128xf32>,
      %cst_331 = arith.constant 1.000000e+00 : f32
      %641 = vector.broadcast %cst_331 : f32 to vector<56x128xf32>
      %642 = arith.subf %521, %641 : vector<56x128xf32>
      %cst_332 = arith.constant 0.000000e+00 : f32
      %643 = vector.broadcast %cst_332 : f32 to vector<56x128xf32>
      %644 = arith.subf %526, %643 : vector<56x128xf32>
      %645 = arith.mulf %642, %642 : vector<56x128xf32>
      %646 = arith.mulf %644, %644 : vector<56x128xf32>
      %647 = arith.addf %645, %646 : vector<56x128xf32>
      %cst_333 = arith.constant 0.000000e+00 : f32
      %648 = vector.broadcast %cst_333 : f32 to vector<56x128xf32>
      %649 = arith.cmpf oeq, %647, %648 : vector<56x128xf32>
      %cst_334 = arith.constant 1.000000e+00 : f32
      %650 = vector.broadcast %cst_334 : f32 to vector<56x128xf32>
      %651 = arith.select %649, %650, %647 : vector<56x128xi1>, vector<56x128xf32>
      %652 = math.log %651 : vector<56x128xf32>
      %653 = arith.mulf %651, %652 : vector<56x128xf32>
      %c7_335 = arith.constant 7 : index
      %c0_336 = arith.constant 0 : index
      %c0_337 = arith.constant 0 : index
      %654 = vector.load %arg4[%c7_335, %c0_336, %c0_337] : memref<9x56x128xf32, #tpu.memory_space<vmem>>, vector<1x56x128xf32>
      %655 = vector.shape_cast %654 : vector<1x56x128xf32> to vector<56x128xf32>
      %656 = vector.shape_cast %653 : vector<56x128xf32> to vector<1x56x128xf32>
      tpu.vector_store %arg4[%c7_335, %c0_336, %c0_337], %656 {strides = array<i32>} : memref<9x56x128xf32, #tpu.memory_space<vmem>>, vector<1x56x128xf32>,
      %cst_338 = arith.constant 1.000000e+00 : f32
      %657 = vector.broadcast %cst_338 : f32 to vector<56x128xf32>
      %658 = arith.subf %521, %657 : vector<56x128xf32>
      %cst_339 = arith.constant 1.000000e+00 : f32
      %659 = vector.broadcast %cst_339 : f32 to vector<56x128xf32>
      %660 = arith.subf %526, %659 : vector<56x128xf32>
      %661 = arith.mulf %658, %658 : vector<56x128xf32>
      %662 = arith.mulf %660, %660 : vector<56x128xf32>
      %663 = arith.addf %661, %662 : vector<56x128xf32>
      %cst_340 = arith.constant 0.000000e+00 : f32
      %664 = vector.broadcast %cst_340 : f32 to vector<56x128xf32>
      %665 = arith.cmpf oeq, %663, %664 : vector<56x128xf32>
      %cst_341 = arith.constant 1.000000e+00 : f32
      %666 = vector.broadcast %cst_341 : f32 to vector<56x128xf32>
      %667 = arith.select %665, %666, %663 : vector<56x128xi1>, vector<56x128xf32>
      %668 = math.log %667 : vector<56x128xf32>
      %669 = arith.mulf %667, %668 : vector<56x128xf32>
      %c8_342 = arith.constant 8 : index
      %c0_343 = arith.constant 0 : index
      %c0_344 = arith.constant 0 : index
      %670 = vector.load %arg4[%c8_342, %c0_343, %c0_344] : memref<9x56x128xf32, #tpu.memory_space<vmem>>, vector<1x56x128xf32>
      %671 = vector.shape_cast %670 : vector<1x56x128xf32> to vector<56x128xf32>
      %672 = vector.shape_cast %669 : vector<56x128xf32> to vector<1x56x128xf32>
      tpu.vector_store %arg4[%c8_342, %c0_343, %c0_344], %672 {strides = array<i32>} : memref<9x56x128xf32, #tpu.memory_space<vmem>>, vector<1x56x128xf32>,
    } else {
    }
    %c0 = arith.constant 0 : index
    %c0_1 = arith.constant 0 : index
    %3 = vector.load %arg5[%c0, %c0_1] : memref<56x128xf32, #tpu.memory_space<vmem>>, vector<56x128xf32>
    %c0_2 = arith.constant 0 : index
    %c0_3 = arith.constant 0 : index
    %4 = vector.load %arg6[%c0_2, %c0_3] : memref<56x128xf32, #tpu.memory_space<vmem>>, vector<56x128xf32>
    %c2_i32 = arith.constant 2 : i32
    %5 = arith.muli %arg1, %c2_i32 : i32
    %c0_i32_4 = arith.constant 0 : i32
    %6 = arith.addi %5, %c0_i32_4 : i32
    %c2_i32_5 = arith.constant 2 : i32
    %7 = arith.muli %6, %c2_i32_5 : i32
    %c0_i32_6 = arith.constant 0 : i32
    %8 = arith.addi %7, %c0_i32_6 : i32
    %c12_i32 = arith.constant 12 : i32
    %9 = arith.muli %8, %c12_i32 : i32
    %c0_i32_7 = arith.constant 0 : i32
    %10 = arith.addi %9, %c0_i32_7 : i32
    %11 = arith.index_cast %10 : i32 to index
    %12 = memref.load %arg2[%11] : memref<48xf32, #tpu.memory_space<smem>>
    %c1_i32 = arith.constant 1 : i32
    %13 = arith.addi %9, %c1_i32 : i32
    %14 = arith.index_cast %13 : i32 to index
    %15 = memref.load %arg2[%14] : memref<48xf32, #tpu.memory_space<smem>>
    %16 = vector.broadcast %15 : f32 to vector<56x128xf32>
    %17 = arith.mulf %16, %3 : vector<56x128xf32>
    %18 = vector.broadcast %12 : f32 to vector<56x128xf32>
    %19 = arith.addf %18, %17 : vector<56x128xf32>
    %c2_i32_8 = arith.constant 2 : i32
    %20 = arith.addi %9, %c2_i32_8 : i32
    %21 = arith.index_cast %20 : i32 to index
    %22 = memref.load %arg2[%21] : memref<48xf32, #tpu.memory_space<smem>>
    %23 = vector.broadcast %22 : f32 to vector<56x128xf32>
    %24 = arith.mulf %23, %4 : vector<56x128xf32>
    %25 = arith.addf %19, %24 : vector<56x128xf32>
    %c0_i32_9 = arith.constant 0 : i32
    %26 = arith.addi %5, %c0_i32_9 : i32
    %c2_i32_10 = arith.constant 2 : i32
    %27 = arith.muli %26, %c2_i32_10 : i32
    %c1_i32_11 = arith.constant 1 : i32
    %28 = arith.addi %27, %c1_i32_11 : i32
    %c12_i32_12 = arith.constant 12 : i32
    %29 = arith.muli %28, %c12_i32_12 : i32
    %c0_i32_13 = arith.constant 0 : i32
    %30 = arith.addi %29, %c0_i32_13 : i32
    %31 = arith.index_cast %30 : i32 to index
    %32 = memref.load %arg2[%31] : memref<48xf32, #tpu.memory_space<smem>>
    %c1_i32_14 = arith.constant 1 : i32
    %33 = arith.addi %29, %c1_i32_14 : i32
    %34 = arith.index_cast %33 : i32 to index
    %35 = memref.load %arg2[%34] : memref<48xf32, #tpu.memory_space<smem>>
    %36 = vector.broadcast %35 : f32 to vector<56x128xf32>
    %37 = arith.mulf %36, %3 : vector<56x128xf32>
    %38 = vector.broadcast %32 : f32 to vector<56x128xf32>
    %39 = arith.addf %38, %37 : vector<56x128xf32>
    %c2_i32_15 = arith.constant 2 : i32
    %40 = arith.addi %29, %c2_i32_15 : i32
    %41 = arith.index_cast %40 : i32 to index
    %42 = memref.load %arg2[%41] : memref<48xf32, #tpu.memory_space<smem>>
    %43 = vector.broadcast %42 : f32 to vector<56x128xf32>
    %44 = arith.mulf %43, %4 : vector<56x128xf32>
    %45 = arith.addf %39, %44 : vector<56x128xf32>
    %c1_i32_16 = arith.constant 1 : i32
    %46 = arith.addi %5, %c1_i32_16 : i32
    %c2_i32_17 = arith.constant 2 : i32
    %47 = arith.muli %46, %c2_i32_17 : i32
    %c0_i32_18 = arith.constant 0 : i32
    %48 = arith.addi %47, %c0_i32_18 : i32
    %c12_i32_19 = arith.constant 12 : i32
    %49 = arith.muli %48, %c12_i32_19 : i32
    %c0_i32_20 = arith.constant 0 : i32
    %50 = arith.addi %49, %c0_i32_20 : i32
    %51 = arith.index_cast %50 : i32 to index
    %52 = memref.load %arg2[%51] : memref<48xf32, #tpu.memory_space<smem>>
    %c1_i32_21 = arith.constant 1 : i32
    %53 = arith.addi %49, %c1_i32_21 : i32
    %54 = arith.index_cast %53 : i32 to index
    %55 = memref.load %arg2[%54] : memref<48xf32, #tpu.memory_space<smem>>
    %56 = vector.broadcast %55 : f32 to vector<56x128xf32>
    %57 = arith.mulf %56, %3 : vector<56x128xf32>
    %58 = vector.broadcast %52 : f32 to vector<56x128xf32>
    %59 = arith.addf %58, %57 : vector<56x128xf32>
    %c2_i32_22 = arith.constant 2 : i32
    %60 = arith.addi %49, %c2_i32_22 : i32
    %61 = arith.index_cast %60 : i32 to index
    %62 = memref.load %arg2[%61] : memref<48xf32, #tpu.memory_space<smem>>
    %63 = vector.broadcast %62 : f32 to vector<56x128xf32>
    %64 = arith.mulf %63, %4 : vector<56x128xf32>
    %65 = arith.addf %59, %64 : vector<56x128xf32>
    %c1_i32_23 = arith.constant 1 : i32
    %66 = arith.addi %5, %c1_i32_23 : i32
    %c2_i32_24 = arith.constant 2 : i32
    %67 = arith.muli %66, %c2_i32_24 : i32
    %c1_i32_25 = arith.constant 1 : i32
    %68 = arith.addi %67, %c1_i32_25 : i32
    %c12_i32_26 = arith.constant 12 : i32
    %69 = arith.muli %68, %c12_i32_26 : i32
    %c0_i32_27 = arith.constant 0 : i32
    %70 = arith.addi %69, %c0_i32_27 : i32
    %71 = arith.index_cast %70 : i32 to index
    %72 = memref.load %arg2[%71] : memref<48xf32, #tpu.memory_space<smem>>
    %c1_i32_28 = arith.constant 1 : i32
    %73 = arith.addi %69, %c1_i32_28 : i32
    %74 = arith.index_cast %73 : i32 to index
    %75 = memref.load %arg2[%74] : memref<48xf32, #tpu.memory_space<smem>>
    %76 = vector.broadcast %75 : f32 to vector<56x128xf32>
    %77 = arith.mulf %76, %3 : vector<56x128xf32>
    %78 = vector.broadcast %72 : f32 to vector<56x128xf32>
    %79 = arith.addf %78, %77 : vector<56x128xf32>
    %c2_i32_29 = arith.constant 2 : i32
    %80 = arith.addi %69, %c2_i32_29 : i32
    %81 = arith.index_cast %80 : i32 to index
    %82 = memref.load %arg2[%81] : memref<48xf32, #tpu.memory_space<smem>>
    %83 = vector.broadcast %82 : f32 to vector<56x128xf32>
    %84 = arith.mulf %83, %4 : vector<56x128xf32>
    %85 = arith.addf %79, %84 : vector<56x128xf32>
    %c0_30 = arith.constant 0 : index
    %c0_31 = arith.constant 0 : index
    %c0_32 = arith.constant 0 : index
    %86 = vector.load %arg4[%c0_30, %c0_31, %c0_32] : memref<9x56x128xf32, #tpu.memory_space<vmem>>, vector<1x56x128xf32>
    %87 = vector.shape_cast %86 : vector<1x56x128xf32> to vector<56x128xf32>
    %c0_i32_33 = arith.constant 0 : i32
    %88 = arith.addi %5, %c0_i32_33 : i32
    %c2_i32_34 = arith.constant 2 : i32
    %89 = arith.muli %88, %c2_i32_34 : i32
    %c0_i32_35 = arith.constant 0 : i32
    %90 = arith.addi %89, %c0_i32_35 : i32
    %c12_i32_36 = arith.constant 12 : i32
    %91 = arith.muli %90, %c12_i32_36 : i32
    %c3_i32 = arith.constant 3 : i32
    %92 = arith.addi %91, %c3_i32 : i32
    %c0_i32_37 = arith.constant 0 : i32
    %93 = arith.addi %92, %c0_i32_37 : i32
    %94 = arith.index_cast %93 : i32 to index
    %95 = memref.load %arg2[%94] : memref<48xf32, #tpu.memory_space<smem>>
    %96 = vector.broadcast %95 : f32 to vector<56x128xf32>
    %97 = arith.mulf %96, %87 : vector<56x128xf32>
    %98 = arith.addf %25, %97 : vector<56x128xf32>
    %c0_i32_38 = arith.constant 0 : i32
    %99 = arith.addi %5, %c0_i32_38 : i32
    %c2_i32_39 = arith.constant 2 : i32
    %100 = arith.muli %99, %c2_i32_39 : i32
    %c1_i32_40 = arith.constant 1 : i32
    %101 = arith.addi %100, %c1_i32_40 : i32
    %c12_i32_41 = arith.constant 12 : i32
    %102 = arith.muli %101, %c12_i32_41 : i32
    %c3_i32_42 = arith.constant 3 : i32
    %103 = arith.addi %102, %c3_i32_42 : i32
    %c0_i32_43 = arith.constant 0 : i32
    %104 = arith.addi %103, %c0_i32_43 : i32
    %105 = arith.index_cast %104 : i32 to index
    %106 = memref.load %arg2[%105] : memref<48xf32, #tpu.memory_space<smem>>
    %107 = vector.broadcast %106 : f32 to vector<56x128xf32>
    %108 = arith.mulf %107, %87 : vector<56x128xf32>
    %109 = arith.addf %45, %108 : vector<56x128xf32>
    %c1_i32_44 = arith.constant 1 : i32
    %110 = arith.addi %5, %c1_i32_44 : i32
    %c2_i32_45 = arith.constant 2 : i32
    %111 = arith.muli %110, %c2_i32_45 : i32
    %c0_i32_46 = arith.constant 0 : i32
    %112 = arith.addi %111, %c0_i32_46 : i32
    %c12_i32_47 = arith.constant 12 : i32
    %113 = arith.muli %112, %c12_i32_47 : i32
    %c3_i32_48 = arith.constant 3 : i32
    %114 = arith.addi %113, %c3_i32_48 : i32
    %c0_i32_49 = arith.constant 0 : i32
    %115 = arith.addi %114, %c0_i32_49 : i32
    %116 = arith.index_cast %115 : i32 to index
    %117 = memref.load %arg2[%116] : memref<48xf32, #tpu.memory_space<smem>>
    %118 = vector.broadcast %117 : f32 to vector<56x128xf32>
    %119 = arith.mulf %118, %87 : vector<56x128xf32>
    %120 = arith.addf %65, %119 : vector<56x128xf32>
    %c1_i32_50 = arith.constant 1 : i32
    %121 = arith.addi %5, %c1_i32_50 : i32
    %c2_i32_51 = arith.constant 2 : i32
    %122 = arith.muli %121, %c2_i32_51 : i32
    %c1_i32_52 = arith.constant 1 : i32
    %123 = arith.addi %122, %c1_i32_52 : i32
    %c12_i32_53 = arith.constant 12 : i32
    %124 = arith.muli %123, %c12_i32_53 : i32
    %c3_i32_54 = arith.constant 3 : i32
    %125 = arith.addi %124, %c3_i32_54 : i32
    %c0_i32_55 = arith.constant 0 : i32
    %126 = arith.addi %125, %c0_i32_55 : i32
    %127 = arith.index_cast %126 : i32 to index
    %128 = memref.load %arg2[%127] : memref<48xf32, #tpu.memory_space<smem>>
    %129 = vector.broadcast %128 : f32 to vector<56x128xf32>
    %130 = arith.mulf %129, %87 : vector<56x128xf32>
    %131 = arith.addf %85, %130 : vector<56x128xf32>
    %c1 = arith.constant 1 : index
    %c0_56 = arith.constant 0 : index
    %c0_57 = arith.constant 0 : index
    %132 = vector.load %arg4[%c1, %c0_56, %c0_57] : memref<9x56x128xf32, #tpu.memory_space<vmem>>, vector<1x56x128xf32>
    %133 = vector.shape_cast %132 : vector<1x56x128xf32> to vector<56x128xf32>
    %c0_i32_58 = arith.constant 0 : i32
    %134 = arith.addi %5, %c0_i32_58 : i32
    %c2_i32_59 = arith.constant 2 : i32
    %135 = arith.muli %134, %c2_i32_59 : i32
    %c0_i32_60 = arith.constant 0 : i32
    %136 = arith.addi %135, %c0_i32_60 : i32
    %c12_i32_61 = arith.constant 12 : i32
    %137 = arith.muli %136, %c12_i32_61 : i32
    %c3_i32_62 = arith.constant 3 : i32
    %138 = arith.addi %137, %c3_i32_62 : i32
    %c1_i32_63 = arith.constant 1 : i32
    %139 = arith.addi %138, %c1_i32_63 : i32
    %140 = arith.index_cast %139 : i32 to index
    %141 = memref.load %arg2[%140] : memref<48xf32, #tpu.memory_space<smem>>
    %142 = vector.broadcast %141 : f32 to vector<56x128xf32>
    %143 = arith.mulf %142, %133 : vector<56x128xf32>
    %144 = arith.addf %98, %143 : vector<56x128xf32>
    %c0_i32_64 = arith.constant 0 : i32
    %145 = arith.addi %5, %c0_i32_64 : i32
    %c2_i32_65 = arith.constant 2 : i32
    %146 = arith.muli %145, %c2_i32_65 : i32
    %c1_i32_66 = arith.constant 1 : i32
    %147 = arith.addi %146, %c1_i32_66 : i32
    %c12_i32_67 = arith.constant 12 : i32
    %148 = arith.muli %147, %c12_i32_67 : i32
    %c3_i32_68 = arith.constant 3 : i32
    %149 = arith.addi %148, %c3_i32_68 : i32
    %c1_i32_69 = arith.constant 1 : i32
    %150 = arith.addi %149, %c1_i32_69 : i32
    %151 = arith.index_cast %150 : i32 to index
    %152 = memref.load %arg2[%151] : memref<48xf32, #tpu.memory_space<smem>>
    %153 = vector.broadcast %152 : f32 to vector<56x128xf32>
    %154 = arith.mulf %153, %133 : vector<56x128xf32>
    %155 = arith.addf %109, %154 : vector<56x128xf32>
    %c1_i32_70 = arith.constant 1 : i32
    %156 = arith.addi %5, %c1_i32_70 : i32
    %c2_i32_71 = arith.constant 2 : i32
    %157 = arith.muli %156, %c2_i32_71 : i32
    %c0_i32_72 = arith.constant 0 : i32
    %158 = arith.addi %157, %c0_i32_72 : i32
    %c12_i32_73 = arith.constant 12 : i32
    %159 = arith.muli %158, %c12_i32_73 : i32
    %c3_i32_74 = arith.constant 3 : i32
    %160 = arith.addi %159, %c3_i32_74 : i32
    %c1_i32_75 = arith.constant 1 : i32
    %161 = arith.addi %160, %c1_i32_75 : i32
    %162 = arith.index_cast %161 : i32 to index
    %163 = memref.load %arg2[%162] : memref<48xf32, #tpu.memory_space<smem>>
    %164 = vector.broadcast %163 : f32 to vector<56x128xf32>
    %165 = arith.mulf %164, %133 : vector<56x128xf32>
    %166 = arith.addf %120, %165 : vector<56x128xf32>
    %c1_i32_76 = arith.constant 1 : i32
    %167 = arith.addi %5, %c1_i32_76 : i32
    %c2_i32_77 = arith.constant 2 : i32
    %168 = arith.muli %167, %c2_i32_77 : i32
    %c1_i32_78 = arith.constant 1 : i32
    %169 = arith.addi %168, %c1_i32_78 : i32
    %c12_i32_79 = arith.constant 12 : i32
    %170 = arith.muli %169, %c12_i32_79 : i32
    %c3_i32_80 = arith.constant 3 : i32
    %171 = arith.addi %170, %c3_i32_80 : i32
    %c1_i32_81 = arith.constant 1 : i32
    %172 = arith.addi %171, %c1_i32_81 : i32
    %173 = arith.index_cast %172 : i32 to index
    %174 = memref.load %arg2[%173] : memref<48xf32, #tpu.memory_space<smem>>
    %175 = vector.broadcast %174 : f32 to vector<56x128xf32>
    %176 = arith.mulf %175, %133 : vector<56x128xf32>
    %177 = arith.addf %131, %176 : vector<56x128xf32>
    %c2 = arith.constant 2 : index
    %c0_82 = arith.constant 0 : index
    %c0_83 = arith.constant 0 : index
    %178 = vector.load %arg4[%c2, %c0_82, %c0_83] : memref<9x56x128xf32, #tpu.memory_space<vmem>>, vector<1x56x128xf32>
    %179 = vector.shape_cast %178 : vector<1x56x128xf32> to vector<56x128xf32>
    %c0_i32_84 = arith.constant 0 : i32
    %180 = arith.addi %5, %c0_i32_84 : i32
    %c2_i32_85 = arith.constant 2 : i32
    %181 = arith.muli %180, %c2_i32_85 : i32
    %c0_i32_86 = arith.constant 0 : i32
    %182 = arith.addi %181, %c0_i32_86 : i32
    %c12_i32_87 = arith.constant 12 : i32
    %183 = arith.muli %182, %c12_i32_87 : i32
    %c3_i32_88 = arith.constant 3 : i32
    %184 = arith.addi %183, %c3_i32_88 : i32
    %c2_i32_89 = arith.constant 2 : i32
    %185 = arith.addi %184, %c2_i32_89 : i32
    %186 = arith.index_cast %185 : i32 to index
    %187 = memref.load %arg2[%186] : memref<48xf32, #tpu.memory_space<smem>>
    %188 = vector.broadcast %187 : f32 to vector<56x128xf32>
    %189 = arith.mulf %188, %179 : vector<56x128xf32>
    %190 = arith.addf %144, %189 : vector<56x128xf32>
    %c0_i32_90 = arith.constant 0 : i32
    %191 = arith.addi %5, %c0_i32_90 : i32
    %c2_i32_91 = arith.constant 2 : i32
    %192 = arith.muli %191, %c2_i32_91 : i32
    %c1_i32_92 = arith.constant 1 : i32
    %193 = arith.addi %192, %c1_i32_92 : i32
    %c12_i32_93 = arith.constant 12 : i32
    %194 = arith.muli %193, %c12_i32_93 : i32
    %c3_i32_94 = arith.constant 3 : i32
    %195 = arith.addi %194, %c3_i32_94 : i32
    %c2_i32_95 = arith.constant 2 : i32
    %196 = arith.addi %195, %c2_i32_95 : i32
    %197 = arith.index_cast %196 : i32 to index
    %198 = memref.load %arg2[%197] : memref<48xf32, #tpu.memory_space<smem>>
    %199 = vector.broadcast %198 : f32 to vector<56x128xf32>
    %200 = arith.mulf %199, %179 : vector<56x128xf32>
    %201 = arith.addf %155, %200 : vector<56x128xf32>
    %c1_i32_96 = arith.constant 1 : i32
    %202 = arith.addi %5, %c1_i32_96 : i32
    %c2_i32_97 = arith.constant 2 : i32
    %203 = arith.muli %202, %c2_i32_97 : i32
    %c0_i32_98 = arith.constant 0 : i32
    %204 = arith.addi %203, %c0_i32_98 : i32
    %c12_i32_99 = arith.constant 12 : i32
    %205 = arith.muli %204, %c12_i32_99 : i32
    %c3_i32_100 = arith.constant 3 : i32
    %206 = arith.addi %205, %c3_i32_100 : i32
    %c2_i32_101 = arith.constant 2 : i32
    %207 = arith.addi %206, %c2_i32_101 : i32
    %208 = arith.index_cast %207 : i32 to index
    %209 = memref.load %arg2[%208] : memref<48xf32, #tpu.memory_space<smem>>
    %210 = vector.broadcast %209 : f32 to vector<56x128xf32>
    %211 = arith.mulf %210, %179 : vector<56x128xf32>
    %212 = arith.addf %166, %211 : vector<56x128xf32>
    %c1_i32_102 = arith.constant 1 : i32
    %213 = arith.addi %5, %c1_i32_102 : i32
    %c2_i32_103 = arith.constant 2 : i32
    %214 = arith.muli %213, %c2_i32_103 : i32
    %c1_i32_104 = arith.constant 1 : i32
    %215 = arith.addi %214, %c1_i32_104 : i32
    %c12_i32_105 = arith.constant 12 : i32
    %216 = arith.muli %215, %c12_i32_105 : i32
    %c3_i32_106 = arith.constant 3 : i32
    %217 = arith.addi %216, %c3_i32_106 : i32
    %c2_i32_107 = arith.constant 2 : i32
    %218 = arith.addi %217, %c2_i32_107 : i32
    %219 = arith.index_cast %218 : i32 to index
    %220 = memref.load %arg2[%219] : memref<48xf32, #tpu.memory_space<smem>>
    %221 = vector.broadcast %220 : f32 to vector<56x128xf32>
    %222 = arith.mulf %221, %179 : vector<56x128xf32>
    %223 = arith.addf %177, %222 : vector<56x128xf32>
    %c3 = arith.constant 3 : index
    %c0_108 = arith.constant 0 : index
    %c0_109 = arith.constant 0 : index
    %224 = vector.load %arg4[%c3, %c0_108, %c0_109] : memref<9x56x128xf32, #tpu.memory_space<vmem>>, vector<1x56x128xf32>
    %225 = vector.shape_cast %224 : vector<1x56x128xf32> to vector<56x128xf32>
    %c0_i32_110 = arith.constant 0 : i32
    %226 = arith.addi %5, %c0_i32_110 : i32
    %c2_i32_111 = arith.constant 2 : i32
    %227 = arith.muli %226, %c2_i32_111 : i32
    %c0_i32_112 = arith.constant 0 : i32
    %228 = arith.addi %227, %c0_i32_112 : i32
    %c12_i32_113 = arith.constant 12 : i32
    %229 = arith.muli %228, %c12_i32_113 : i32
    %c3_i32_114 = arith.constant 3 : i32
    %230 = arith.addi %229, %c3_i32_114 : i32
    %c3_i32_115 = arith.constant 3 : i32
    %231 = arith.addi %230, %c3_i32_115 : i32
    %232 = arith.index_cast %231 : i32 to index
    %233 = memref.load %arg2[%232] : memref<48xf32, #tpu.memory_space<smem>>
    %234 = vector.broadcast %233 : f32 to vector<56x128xf32>
    %235 = arith.mulf %234, %225 : vector<56x128xf32>
    %236 = arith.addf %190, %235 : vector<56x128xf32>
    %c0_i32_116 = arith.constant 0 : i32
    %237 = arith.addi %5, %c0_i32_116 : i32
    %c2_i32_117 = arith.constant 2 : i32
    %238 = arith.muli %237, %c2_i32_117 : i32
    %c1_i32_118 = arith.constant 1 : i32
    %239 = arith.addi %238, %c1_i32_118 : i32
    %c12_i32_119 = arith.constant 12 : i32
    %240 = arith.muli %239, %c12_i32_119 : i32
    %c3_i32_120 = arith.constant 3 : i32
    %241 = arith.addi %240, %c3_i32_120 : i32
    %c3_i32_121 = arith.constant 3 : i32
    %242 = arith.addi %241, %c3_i32_121 : i32
    %243 = arith.index_cast %242 : i32 to index
    %244 = memref.load %arg2[%243] : memref<48xf32, #tpu.memory_space<smem>>
    %245 = vector.broadcast %244 : f32 to vector<56x128xf32>
    %246 = arith.mulf %245, %225 : vector<56x128xf32>
    %247 = arith.addf %201, %246 : vector<56x128xf32>
    %c1_i32_122 = arith.constant 1 : i32
    %248 = arith.addi %5, %c1_i32_122 : i32
    %c2_i32_123 = arith.constant 2 : i32
    %249 = arith.muli %248, %c2_i32_123 : i32
    %c0_i32_124 = arith.constant 0 : i32
    %250 = arith.addi %249, %c0_i32_124 : i32
    %c12_i32_125 = arith.constant 12 : i32
    %251 = arith.muli %250, %c12_i32_125 : i32
    %c3_i32_126 = arith.constant 3 : i32
    %252 = arith.addi %251, %c3_i32_126 : i32
    %c3_i32_127 = arith.constant 3 : i32
    %253 = arith.addi %252, %c3_i32_127 : i32
    %254 = arith.index_cast %253 : i32 to index
    %255 = memref.load %arg2[%254] : memref<48xf32, #tpu.memory_space<smem>>
    %256 = vector.broadcast %255 : f32 to vector<56x128xf32>
    %257 = arith.mulf %256, %225 : vector<56x128xf32>
    %258 = arith.addf %212, %257 : vector<56x128xf32>
    %c1_i32_128 = arith.constant 1 : i32
    %259 = arith.addi %5, %c1_i32_128 : i32
    %c2_i32_129 = arith.constant 2 : i32
    %260 = arith.muli %259, %c2_i32_129 : i32
    %c1_i32_130 = arith.constant 1 : i32
    %261 = arith.addi %260, %c1_i32_130 : i32
    %c12_i32_131 = arith.constant 12 : i32
    %262 = arith.muli %261, %c12_i32_131 : i32
    %c3_i32_132 = arith.constant 3 : i32
    %263 = arith.addi %262, %c3_i32_132 : i32
    %c3_i32_133 = arith.constant 3 : i32
    %264 = arith.addi %263, %c3_i32_133 : i32
    %265 = arith.index_cast %264 : i32 to index
    %266 = memref.load %arg2[%265] : memref<48xf32, #tpu.memory_space<smem>>
    %267 = vector.broadcast %266 : f32 to vector<56x128xf32>
    %268 = arith.mulf %267, %225 : vector<56x128xf32>
    %269 = arith.addf %223, %268 : vector<56x128xf32>
    %c4 = arith.constant 4 : index
    %c0_134 = arith.constant 0 : index
    %c0_135 = arith.constant 0 : index
    %270 = vector.load %arg4[%c4, %c0_134, %c0_135] : memref<9x56x128xf32, #tpu.memory_space<vmem>>, vector<1x56x128xf32>
    %271 = vector.shape_cast %270 : vector<1x56x128xf32> to vector<56x128xf32>
    %c0_i32_136 = arith.constant 0 : i32
    %272 = arith.addi %5, %c0_i32_136 : i32
    %c2_i32_137 = arith.constant 2 : i32
    %273 = arith.muli %272, %c2_i32_137 : i32
    %c0_i32_138 = arith.constant 0 : i32
    %274 = arith.addi %273, %c0_i32_138 : i32
    %c12_i32_139 = arith.constant 12 : i32
    %275 = arith.muli %274, %c12_i32_139 : i32
    %c3_i32_140 = arith.constant 3 : i32
    %276 = arith.addi %275, %c3_i32_140 : i32
    %c4_i32 = arith.constant 4 : i32
    %277 = arith.addi %276, %c4_i32 : i32
    %278 = arith.index_cast %277 : i32 to index
    %279 = memref.load %arg2[%278] : memref<48xf32, #tpu.memory_space<smem>>
    %280 = vector.broadcast %279 : f32 to vector<56x128xf32>
    %281 = arith.mulf %280, %271 : vector<56x128xf32>
    %282 = arith.addf %236, %281 : vector<56x128xf32>
    %c0_i32_141 = arith.constant 0 : i32
    %283 = arith.addi %5, %c0_i32_141 : i32
    %c2_i32_142 = arith.constant 2 : i32
    %284 = arith.muli %283, %c2_i32_142 : i32
    %c1_i32_143 = arith.constant 1 : i32
    %285 = arith.addi %284, %c1_i32_143 : i32
    %c12_i32_144 = arith.constant 12 : i32
    %286 = arith.muli %285, %c12_i32_144 : i32
    %c3_i32_145 = arith.constant 3 : i32
    %287 = arith.addi %286, %c3_i32_145 : i32
    %c4_i32_146 = arith.constant 4 : i32
    %288 = arith.addi %287, %c4_i32_146 : i32
    %289 = arith.index_cast %288 : i32 to index
    %290 = memref.load %arg2[%289] : memref<48xf32, #tpu.memory_space<smem>>
    %291 = vector.broadcast %290 : f32 to vector<56x128xf32>
    %292 = arith.mulf %291, %271 : vector<56x128xf32>
    %293 = arith.addf %247, %292 : vector<56x128xf32>
    %c1_i32_147 = arith.constant 1 : i32
    %294 = arith.addi %5, %c1_i32_147 : i32
    %c2_i32_148 = arith.constant 2 : i32
    %295 = arith.muli %294, %c2_i32_148 : i32
    %c0_i32_149 = arith.constant 0 : i32
    %296 = arith.addi %295, %c0_i32_149 : i32
    %c12_i32_150 = arith.constant 12 : i32
    %297 = arith.muli %296, %c12_i32_150 : i32
    %c3_i32_151 = arith.constant 3 : i32
    %298 = arith.addi %297, %c3_i32_151 : i32
    %c4_i32_152 = arith.constant 4 : i32
    %299 = arith.addi %298, %c4_i32_152 : i32
    %300 = arith.index_cast %299 : i32 to index
    %301 = memref.load %arg2[%300] : memref<48xf32, #tpu.memory_space<smem>>
    %302 = vector.broadcast %301 : f32 to vector<56x128xf32>
    %303 = arith.mulf %302, %271 : vector<56x128xf32>
    %304 = arith.addf %258, %303 : vector<56x128xf32>
    %c1_i32_153 = arith.constant 1 : i32
    %305 = arith.addi %5, %c1_i32_153 : i32
    %c2_i32_154 = arith.constant 2 : i32
    %306 = arith.muli %305, %c2_i32_154 : i32
    %c1_i32_155 = arith.constant 1 : i32
    %307 = arith.addi %306, %c1_i32_155 : i32
    %c12_i32_156 = arith.constant 12 : i32
    %308 = arith.muli %307, %c12_i32_156 : i32
    %c3_i32_157 = arith.constant 3 : i32
    %309 = arith.addi %308, %c3_i32_157 : i32
    %c4_i32_158 = arith.constant 4 : i32
    %310 = arith.addi %309, %c4_i32_158 : i32
    %311 = arith.index_cast %310 : i32 to index
    %312 = memref.load %arg2[%311] : memref<48xf32, #tpu.memory_space<smem>>
    %313 = vector.broadcast %312 : f32 to vector<56x128xf32>
    %314 = arith.mulf %313, %271 : vector<56x128xf32>
    %315 = arith.addf %269, %314 : vector<56x128xf32>
    %c5 = arith.constant 5 : index
    %c0_159 = arith.constant 0 : index
    %c0_160 = arith.constant 0 : index
    %316 = vector.load %arg4[%c5, %c0_159, %c0_160] : memref<9x56x128xf32, #tpu.memory_space<vmem>>, vector<1x56x128xf32>
    %317 = vector.shape_cast %316 : vector<1x56x128xf32> to vector<56x128xf32>
    %c0_i32_161 = arith.constant 0 : i32
    %318 = arith.addi %5, %c0_i32_161 : i32
    %c2_i32_162 = arith.constant 2 : i32
    %319 = arith.muli %318, %c2_i32_162 : i32
    %c0_i32_163 = arith.constant 0 : i32
    %320 = arith.addi %319, %c0_i32_163 : i32
    %c12_i32_164 = arith.constant 12 : i32
    %321 = arith.muli %320, %c12_i32_164 : i32
    %c3_i32_165 = arith.constant 3 : i32
    %322 = arith.addi %321, %c3_i32_165 : i32
    %c5_i32 = arith.constant 5 : i32
    %323 = arith.addi %322, %c5_i32 : i32
    %324 = arith.index_cast %323 : i32 to index
    %325 = memref.load %arg2[%324] : memref<48xf32, #tpu.memory_space<smem>>
    %326 = vector.broadcast %325 : f32 to vector<56x128xf32>
    %327 = arith.mulf %326, %317 : vector<56x128xf32>
    %328 = arith.addf %282, %327 : vector<56x128xf32>
    %c0_i32_166 = arith.constant 0 : i32
    %329 = arith.addi %5, %c0_i32_166 : i32
    %c2_i32_167 = arith.constant 2 : i32
    %330 = arith.muli %329, %c2_i32_167 : i32
    %c1_i32_168 = arith.constant 1 : i32
    %331 = arith.addi %330, %c1_i32_168 : i32
    %c12_i32_169 = arith.constant 12 : i32
    %332 = arith.muli %331, %c12_i32_169 : i32
    %c3_i32_170 = arith.constant 3 : i32
    %333 = arith.addi %332, %c3_i32_170 : i32
    %c5_i32_171 = arith.constant 5 : i32
    %334 = arith.addi %333, %c5_i32_171 : i32
    %335 = arith.index_cast %334 : i32 to index
    %336 = memref.load %arg2[%335] : memref<48xf32, #tpu.memory_space<smem>>
    %337 = vector.broadcast %336 : f32 to vector<56x128xf32>
    %338 = arith.mulf %337, %317 : vector<56x128xf32>
    %339 = arith.addf %293, %338 : vector<56x128xf32>
    %c1_i32_172 = arith.constant 1 : i32
    %340 = arith.addi %5, %c1_i32_172 : i32
    %c2_i32_173 = arith.constant 2 : i32
    %341 = arith.muli %340, %c2_i32_173 : i32
    %c0_i32_174 = arith.constant 0 : i32
    %342 = arith.addi %341, %c0_i32_174 : i32
    %c12_i32_175 = arith.constant 12 : i32
    %343 = arith.muli %342, %c12_i32_175 : i32
    %c3_i32_176 = arith.constant 3 : i32
    %344 = arith.addi %343, %c3_i32_176 : i32
    %c5_i32_177 = arith.constant 5 : i32
    %345 = arith.addi %344, %c5_i32_177 : i32
    %346 = arith.index_cast %345 : i32 to index
    %347 = memref.load %arg2[%346] : memref<48xf32, #tpu.memory_space<smem>>
    %348 = vector.broadcast %347 : f32 to vector<56x128xf32>
    %349 = arith.mulf %348, %317 : vector<56x128xf32>
    %350 = arith.addf %304, %349 : vector<56x128xf32>
    %c1_i32_178 = arith.constant 1 : i32
    %351 = arith.addi %5, %c1_i32_178 : i32
    %c2_i32_179 = arith.constant 2 : i32
    %352 = arith.muli %351, %c2_i32_179 : i32
    %c1_i32_180 = arith.constant 1 : i32
    %353 = arith.addi %352, %c1_i32_180 : i32
    %c12_i32_181 = arith.constant 12 : i32
    %354 = arith.muli %353, %c12_i32_181 : i32
    %c3_i32_182 = arith.constant 3 : i32
    %355 = arith.addi %354, %c3_i32_182 : i32
    %c5_i32_183 = arith.constant 5 : i32
    %356 = arith.addi %355, %c5_i32_183 : i32
    %357 = arith.index_cast %356 : i32 to index
    %358 = memref.load %arg2[%357] : memref<48xf32, #tpu.memory_space<smem>>
    %359 = vector.broadcast %358 : f32 to vector<56x128xf32>
    %360 = arith.mulf %359, %317 : vector<56x128xf32>
    %361 = arith.addf %315, %360 : vector<56x128xf32>
    %c6 = arith.constant 6 : index
    %c0_184 = arith.constant 0 : index
    %c0_185 = arith.constant 0 : index
    %362 = vector.load %arg4[%c6, %c0_184, %c0_185] : memref<9x56x128xf32, #tpu.memory_space<vmem>>, vector<1x56x128xf32>
    %363 = vector.shape_cast %362 : vector<1x56x128xf32> to vector<56x128xf32>
    %c0_i32_186 = arith.constant 0 : i32
    %364 = arith.addi %5, %c0_i32_186 : i32
    %c2_i32_187 = arith.constant 2 : i32
    %365 = arith.muli %364, %c2_i32_187 : i32
    %c0_i32_188 = arith.constant 0 : i32
    %366 = arith.addi %365, %c0_i32_188 : i32
    %c12_i32_189 = arith.constant 12 : i32
    %367 = arith.muli %366, %c12_i32_189 : i32
    %c3_i32_190 = arith.constant 3 : i32
    %368 = arith.addi %367, %c3_i32_190 : i32
    %c6_i32 = arith.constant 6 : i32
    %369 = arith.addi %368, %c6_i32 : i32
    %370 = arith.index_cast %369 : i32 to index
    %371 = memref.load %arg2[%370] : memref<48xf32, #tpu.memory_space<smem>>
    %372 = vector.broadcast %371 : f32 to vector<56x128xf32>
    %373 = arith.mulf %372, %363 : vector<56x128xf32>
    %374 = arith.addf %328, %373 : vector<56x128xf32>
    %c0_i32_191 = arith.constant 0 : i32
    %375 = arith.addi %5, %c0_i32_191 : i32
    %c2_i32_192 = arith.constant 2 : i32
    %376 = arith.muli %375, %c2_i32_192 : i32
    %c1_i32_193 = arith.constant 1 : i32
    %377 = arith.addi %376, %c1_i32_193 : i32
    %c12_i32_194 = arith.constant 12 : i32
    %378 = arith.muli %377, %c12_i32_194 : i32
    %c3_i32_195 = arith.constant 3 : i32
    %379 = arith.addi %378, %c3_i32_195 : i32
    %c6_i32_196 = arith.constant 6 : i32
    %380 = arith.addi %379, %c6_i32_196 : i32
    %381 = arith.index_cast %380 : i32 to index
    %382 = memref.load %arg2[%381] : memref<48xf32, #tpu.memory_space<smem>>
    %383 = vector.broadcast %382 : f32 to vector<56x128xf32>
    %384 = arith.mulf %383, %363 : vector<56x128xf32>
    %385 = arith.addf %339, %384 : vector<56x128xf32>
    %c1_i32_197 = arith.constant 1 : i32
    %386 = arith.addi %5, %c1_i32_197 : i32
    %c2_i32_198 = arith.constant 2 : i32
    %387 = arith.muli %386, %c2_i32_198 : i32
    %c0_i32_199 = arith.constant 0 : i32
    %388 = arith.addi %387, %c0_i32_199 : i32
    %c12_i32_200 = arith.constant 12 : i32
    %389 = arith.muli %388, %c12_i32_200 : i32
    %c3_i32_201 = arith.constant 3 : i32
    %390 = arith.addi %389, %c3_i32_201 : i32
    %c6_i32_202 = arith.constant 6 : i32
    %391 = arith.addi %390, %c6_i32_202 : i32
    %392 = arith.index_cast %391 : i32 to index
    %393 = memref.load %arg2[%392] : memref<48xf32, #tpu.memory_space<smem>>
    %394 = vector.broadcast %393 : f32 to vector<56x128xf32>
    %395 = arith.mulf %394, %363 : vector<56x128xf32>
    %396 = arith.addf %350, %395 : vector<56x128xf32>
    %c1_i32_203 = arith.constant 1 : i32
    %397 = arith.addi %5, %c1_i32_203 : i32
    %c2_i32_204 = arith.constant 2 : i32
    %398 = arith.muli %397, %c2_i32_204 : i32
    %c1_i32_205 = arith.constant 1 : i32
    %399 = arith.addi %398, %c1_i32_205 : i32
    %c12_i32_206 = arith.constant 12 : i32
    %400 = arith.muli %399, %c12_i32_206 : i32
    %c3_i32_207 = arith.constant 3 : i32
    %401 = arith.addi %400, %c3_i32_207 : i32
    %c6_i32_208 = arith.constant 6 : i32
    %402 = arith.addi %401, %c6_i32_208 : i32
    %403 = arith.index_cast %402 : i32 to index
    %404 = memref.load %arg2[%403] : memref<48xf32, #tpu.memory_space<smem>>
    %405 = vector.broadcast %404 : f32 to vector<56x128xf32>
    %406 = arith.mulf %405, %363 : vector<56x128xf32>
    %407 = arith.addf %361, %406 : vector<56x128xf32>
    %c7 = arith.constant 7 : index
    %c0_209 = arith.constant 0 : index
    %c0_210 = arith.constant 0 : index
    %408 = vector.load %arg4[%c7, %c0_209, %c0_210] : memref<9x56x128xf32, #tpu.memory_space<vmem>>, vector<1x56x128xf32>
    %409 = vector.shape_cast %408 : vector<1x56x128xf32> to vector<56x128xf32>
    %c0_i32_211 = arith.constant 0 : i32
    %410 = arith.addi %5, %c0_i32_211 : i32
    %c2_i32_212 = arith.constant 2 : i32
    %411 = arith.muli %410, %c2_i32_212 : i32
    %c0_i32_213 = arith.constant 0 : i32
    %412 = arith.addi %411, %c0_i32_213 : i32
    %c12_i32_214 = arith.constant 12 : i32
    %413 = arith.muli %412, %c12_i32_214 : i32
    %c3_i32_215 = arith.constant 3 : i32
    %414 = arith.addi %413, %c3_i32_215 : i32
    %c7_i32 = arith.constant 7 : i32
    %415 = arith.addi %414, %c7_i32 : i32
    %416 = arith.index_cast %415 : i32 to index
    %417 = memref.load %arg2[%416] : memref<48xf32, #tpu.memory_space<smem>>
    %418 = vector.broadcast %417 : f32 to vector<56x128xf32>
    %419 = arith.mulf %418, %409 : vector<56x128xf32>
    %420 = arith.addf %374, %419 : vector<56x128xf32>
    %c0_i32_216 = arith.constant 0 : i32
    %421 = arith.addi %5, %c0_i32_216 : i32
    %c2_i32_217 = arith.constant 2 : i32
    %422 = arith.muli %421, %c2_i32_217 : i32
    %c1_i32_218 = arith.constant 1 : i32
    %423 = arith.addi %422, %c1_i32_218 : i32
    %c12_i32_219 = arith.constant 12 : i32
    %424 = arith.muli %423, %c12_i32_219 : i32
    %c3_i32_220 = arith.constant 3 : i32
    %425 = arith.addi %424, %c3_i32_220 : i32
    %c7_i32_221 = arith.constant 7 : i32
    %426 = arith.addi %425, %c7_i32_221 : i32
    %427 = arith.index_cast %426 : i32 to index
    %428 = memref.load %arg2[%427] : memref<48xf32, #tpu.memory_space<smem>>
    %429 = vector.broadcast %428 : f32 to vector<56x128xf32>
    %430 = arith.mulf %429, %409 : vector<56x128xf32>
    %431 = arith.addf %385, %430 : vector<56x128xf32>
    %c1_i32_222 = arith.constant 1 : i32
    %432 = arith.addi %5, %c1_i32_222 : i32
    %c2_i32_223 = arith.constant 2 : i32
    %433 = arith.muli %432, %c2_i32_223 : i32
    %c0_i32_224 = arith.constant 0 : i32
    %434 = arith.addi %433, %c0_i32_224 : i32
    %c12_i32_225 = arith.constant 12 : i32
    %435 = arith.muli %434, %c12_i32_225 : i32
    %c3_i32_226 = arith.constant 3 : i32
    %436 = arith.addi %435, %c3_i32_226 : i32
    %c7_i32_227 = arith.constant 7 : i32
    %437 = arith.addi %436, %c7_i32_227 : i32
    %438 = arith.index_cast %437 : i32 to index
    %439 = memref.load %arg2[%438] : memref<48xf32, #tpu.memory_space<smem>>
    %440 = vector.broadcast %439 : f32 to vector<56x128xf32>
    %441 = arith.mulf %440, %409 : vector<56x128xf32>
    %442 = arith.addf %396, %441 : vector<56x128xf32>
    %c1_i32_228 = arith.constant 1 : i32
    %443 = arith.addi %5, %c1_i32_228 : i32
    %c2_i32_229 = arith.constant 2 : i32
    %444 = arith.muli %443, %c2_i32_229 : i32
    %c1_i32_230 = arith.constant 1 : i32
    %445 = arith.addi %444, %c1_i32_230 : i32
    %c12_i32_231 = arith.constant 12 : i32
    %446 = arith.muli %445, %c12_i32_231 : i32
    %c3_i32_232 = arith.constant 3 : i32
    %447 = arith.addi %446, %c3_i32_232 : i32
    %c7_i32_233 = arith.constant 7 : i32
    %448 = arith.addi %447, %c7_i32_233 : i32
    %449 = arith.index_cast %448 : i32 to index
    %450 = memref.load %arg2[%449] : memref<48xf32, #tpu.memory_space<smem>>
    %451 = vector.broadcast %450 : f32 to vector<56x128xf32>
    %452 = arith.mulf %451, %409 : vector<56x128xf32>
    %453 = arith.addf %407, %452 : vector<56x128xf32>
    %c8 = arith.constant 8 : index
    %c0_234 = arith.constant 0 : index
    %c0_235 = arith.constant 0 : index
    %454 = vector.load %arg4[%c8, %c0_234, %c0_235] : memref<9x56x128xf32, #tpu.memory_space<vmem>>, vector<1x56x128xf32>
    %455 = vector.shape_cast %454 : vector<1x56x128xf32> to vector<56x128xf32>
    %c0_i32_236 = arith.constant 0 : i32
    %456 = arith.addi %5, %c0_i32_236 : i32
    %c2_i32_237 = arith.constant 2 : i32
    %457 = arith.muli %456, %c2_i32_237 : i32
    %c0_i32_238 = arith.constant 0 : i32
    %458 = arith.addi %457, %c0_i32_238 : i32
    %c12_i32_239 = arith.constant 12 : i32
    %459 = arith.muli %458, %c12_i32_239 : i32
    %c3_i32_240 = arith.constant 3 : i32
    %460 = arith.addi %459, %c3_i32_240 : i32
    %c8_i32 = arith.constant 8 : i32
    %461 = arith.addi %460, %c8_i32 : i32
    %462 = arith.index_cast %461 : i32 to index
    %463 = memref.load %arg2[%462] : memref<48xf32, #tpu.memory_space<smem>>
    %464 = vector.broadcast %463 : f32 to vector<56x128xf32>
    %465 = arith.mulf %464, %455 : vector<56x128xf32>
    %466 = arith.addf %420, %465 : vector<56x128xf32>
    %c0_i32_241 = arith.constant 0 : i32
    %467 = arith.addi %5, %c0_i32_241 : i32
    %c2_i32_242 = arith.constant 2 : i32
    %468 = arith.muli %467, %c2_i32_242 : i32
    %c1_i32_243 = arith.constant 1 : i32
    %469 = arith.addi %468, %c1_i32_243 : i32
    %c12_i32_244 = arith.constant 12 : i32
    %470 = arith.muli %469, %c12_i32_244 : i32
    %c3_i32_245 = arith.constant 3 : i32
    %471 = arith.addi %470, %c3_i32_245 : i32
    %c8_i32_246 = arith.constant 8 : i32
    %472 = arith.addi %471, %c8_i32_246 : i32
    %473 = arith.index_cast %472 : i32 to index
    %474 = memref.load %arg2[%473] : memref<48xf32, #tpu.memory_space<smem>>
    %475 = vector.broadcast %474 : f32 to vector<56x128xf32>
    %476 = arith.mulf %475, %455 : vector<56x128xf32>
    %477 = arith.addf %431, %476 : vector<56x128xf32>
    %c1_i32_247 = arith.constant 1 : i32
    %478 = arith.addi %5, %c1_i32_247 : i32
    %c2_i32_248 = arith.constant 2 : i32
    %479 = arith.muli %478, %c2_i32_248 : i32
    %c0_i32_249 = arith.constant 0 : i32
    %480 = arith.addi %479, %c0_i32_249 : i32
    %c12_i32_250 = arith.constant 12 : i32
    %481 = arith.muli %480, %c12_i32_250 : i32
    %c3_i32_251 = arith.constant 3 : i32
    %482 = arith.addi %481, %c3_i32_251 : i32
    %c8_i32_252 = arith.constant 8 : i32
    %483 = arith.addi %482, %c8_i32_252 : i32
    %484 = arith.index_cast %483 : i32 to index
    %485 = memref.load %arg2[%484] : memref<48xf32, #tpu.memory_space<smem>>
    %486 = vector.broadcast %485 : f32 to vector<56x128xf32>
    %487 = arith.mulf %486, %455 : vector<56x128xf32>
    %488 = arith.addf %442, %487 : vector<56x128xf32>
    %c1_i32_253 = arith.constant 1 : i32
    %489 = arith.addi %5, %c1_i32_253 : i32
    %c2_i32_254 = arith.constant 2 : i32
    %490 = arith.muli %489, %c2_i32_254 : i32
    %c1_i32_255 = arith.constant 1 : i32
    %491 = arith.addi %490, %c1_i32_255 : i32
    %c12_i32_256 = arith.constant 12 : i32
    %492 = arith.muli %491, %c12_i32_256 : i32
    %c3_i32_257 = arith.constant 3 : i32
    %493 = arith.addi %492, %c3_i32_257 : i32
    %c8_i32_258 = arith.constant 8 : i32
    %494 = arith.addi %493, %c8_i32_258 : i32
    %495 = arith.index_cast %494 : i32 to index
    %496 = memref.load %arg2[%495] : memref<48xf32, #tpu.memory_space<smem>>
    %497 = vector.broadcast %496 : f32 to vector<56x128xf32>
    %498 = arith.mulf %497, %455 : vector<56x128xf32>
    %499 = arith.addf %453, %498 : vector<56x128xf32>
    %c0_259 = arith.constant 0 : index
    %c0_260 = arith.constant 0 : index
    %c0_261 = arith.constant 0 : index
    %c0_262 = arith.constant 0 : index
    %500 = vector.load %arg3[%c0_259, %c0_260, %c0_261, %c0_262] : memref<2x2x56x128xf32, #tpu.memory_space<vmem>>, vector<1x1x56x128xf32>
    %501 = vector.shape_cast %500 : vector<1x1x56x128xf32> to vector<56x128xf32>
    %502 = vector.shape_cast %466 : vector<56x128xf32> to vector<1x1x56x128xf32>
    tpu.vector_store %arg3[%c0_259, %c0_260, %c0_261, %c0_262], %502 {strides = array<i32>} : memref<2x2x56x128xf32, #tpu.memory_space<vmem>>, vector<1x1x56x128xf32>,
    %c0_263 = arith.constant 0 : index
    %c1_264 = arith.constant 1 : index
    %c0_265 = arith.constant 0 : index
    %c0_266 = arith.constant 0 : index
    %503 = vector.load %arg3[%c0_263, %c1_264, %c0_265, %c0_266] : memref<2x2x56x128xf32, #tpu.memory_space<vmem>>, vector<1x1x56x128xf32>
    %504 = vector.shape_cast %503 : vector<1x1x56x128xf32> to vector<56x128xf32>
    %505 = vector.shape_cast %477 : vector<56x128xf32> to vector<1x1x56x128xf32>
    tpu.vector_store %arg3[%c0_263, %c1_264, %c0_265, %c0_266], %505 {strides = array<i32>} : memref<2x2x56x128xf32, #tpu.memory_space<vmem>>, vector<1x1x56x128xf32>,
    %c1_267 = arith.constant 1 : index
    %c0_268 = arith.constant 0 : index
    %c0_269 = arith.constant 0 : index
    %c0_270 = arith.constant 0 : index
    %506 = vector.load %arg3[%c1_267, %c0_268, %c0_269, %c0_270] : memref<2x2x56x128xf32, #tpu.memory_space<vmem>>, vector<1x1x56x128xf32>
    %507 = vector.shape_cast %506 : vector<1x1x56x128xf32> to vector<56x128xf32>
    %508 = vector.shape_cast %488 : vector<56x128xf32> to vector<1x1x56x128xf32>
    tpu.vector_store %arg3[%c1_267, %c0_268, %c0_269, %c0_270], %508 {strides = array<i32>} : memref<2x2x56x128xf32, #tpu.memory_space<vmem>>, vector<1x1x56x128xf32>,
    %c1_271 = arith.constant 1 : index
    %c1_272 = arith.constant 1 : index
    %c0_273 = arith.constant 0 : index
    %c0_274 = arith.constant 0 : index
    %509 = vector.load %arg3[%c1_271, %c1_272, %c0_273, %c0_274] : memref<2x2x56x128xf32, #tpu.memory_space<vmem>>, vector<1x1x56x128xf32>
    %510 = vector.shape_cast %509 : vector<1x1x56x128xf32> to vector<56x128xf32>
    %511 = vector.shape_cast %499 : vector<56x128xf32> to vector<1x1x56x128xf32>
    tpu.vector_store %arg3[%c1_271, %c1_272, %c0_273, %c0_274], %511 {strides = array<i32>} : memref<2x2x56x128xf32, #tpu.memory_space<vmem>>, vector<1x1x56x128xf32>,
    return
  }
  func.func @transform_0(%arg0: i32, %arg1: i32) -> i32 {
    %c0_i32 = arith.constant 0 : i32
    %c0_i32_0 = arith.constant 0 : i32
    return %c0_i32 : i32
  }
  func.func @transform_1(%arg0: i32, %arg1: i32) -> (i32, i32, i32, i32) {
    %c0_i32 = arith.constant 0 : i32
    %c0_i32_0 = arith.constant 0 : i32
    %c0_i32_1 = arith.constant 0 : i32
    return %arg1, %c0_i32, %arg0, %c0_i32_0 : i32, i32, i32, i32
  }
}

</mosaic_0001>

<llo_original>
// kernel: tpu_custom_call.1
$region0: #{tpu_custom_call.1}
  #allocation0 [shape = 'u32[]', space=smem, size = 0x4, offset = 0x4, fixed_abs, tag = 'smem constant byte address 0x4 - core index']
  #allocation1 [shape = 'u32[144,128]{1,0:T(1,128)}', space=vmem, size = 0x12000, scoped, tag = 'internal scratch']
  #allocation2 [shape = 'f32[9,56,128]{2,1,0:T(8,128)}', space=vmem, size = 0x3f000, scoped, tag = 'scratch operand']
  #allocation3 [shape = 'f32[56,128]{1,0:T(8,128)}', space=vmem, size = 0x7000, scoped, tag = 'scratch operand']
  #allocation4 [shape = 'f32[56,128]{1,0:T(8,128)}', space=vmem, size = 0x7000, scoped, tag = 'scratch operand']
  %s0 = inlined_call_operand.hbm [shape: f32[48], index: 0, kind: input, shape index: {}]
  %s1 = inlined_call_operand.hbm [shape: f32[2,2,56,128], index: 1, kind: output, shape index: {}]
  %s2 = sld [smem:[#allocation0]]
  $region22: #{tpu_custom_call.1} parent=0
    _
  %s4 = ssub.s32 1, %s2
  %s5 = scalar_select 0, %s4, %s2
  $region1: #{tpu_custom_call.1} parent=0
    #allocation5 [shape = 'u8[512]{0}', space=smem, size = 0x200, scoped, tag = 'input window, operand 0, single buffered']
    #allocation6 [shape = 's32[1]{0}', space=sflag, size = 0x4, scoped, tag = 'scoped memory for tpu_custom_call.1']
    #allocation7 [shape = 's32[1]{0}', space=sflag, size = 0x4, scoped, tag = 'scoped memory for tpu_custom_call.1']
    #allocation8 [shape = 'u8[114688]{0}', space=vmem, size = 0x1c000, scoped, tag = 'output window, operand 0, single buffered']
    %6 = vsyncpa [#allocation7], 0
    %7 = vsyncpa [#allocation6], 0
    // Predicated region
    $region2: #{tpu_custom_call.1} parent=1 // pred_check
      _
    $region3: #{tpu_custom_call.1} parent=1 // pred_check_branch
      %9 = sbr.rel (0) target = $region5
    $region4: #{tpu_custom_call.1} parent=1 // pred_region
      %s11 = ssub.s32 16, 16
      %12 = vsyncadd [#allocation7], %s11
      %15 = dma.hbm_to_smem %s0, 16, [#allocation5], [#allocation7]
    $region5: #{tpu_custom_call.1} parent=1 // pred_fallthru
      _
    // Predicated region
    $region6: #{tpu_custom_call.1} parent=1 // pred_check
      _
    $region7: #{tpu_custom_call.1} parent=1 // pred_check_branch
      %17 = sbr.rel (0) target = $region9
    $region8: #{tpu_custom_call.1} parent=1 // pred_region
      %18 = dma.done [#allocation7], 16
    $region9: #{tpu_custom_call.1} parent=1 // pred_fallthru
      _
    %19 = sfence
    %p20 = scmp.eq.s32.totalorder 0, 0
    // Predicated region
    $region10: #{tpu_custom_call.1} parent=1 // pred_check
      %p21 = pneg %p20
    $region11: #{tpu_custom_call.1} parent=1 // pred_check_branch
      %23 = sbr.rel (%p21) target = $region13
    $region12: #{tpu_custom_call.1} parent=1 // pred_region
      %v24 = vlaneseq
      %v25 = vshrl.u32 %v24, 7
      %v26 = vadd.s32 %v25, 8
      %v27 = vadd.s32 %v25, 16
      %v28 = vadd.s32 %v25, 24
      %v29 = vadd.s32 %v25, 32
      %v30 = vadd.s32 %v25, 40
      %v31 = vadd.s32 %v25, 48
      %s32 = smul.u32 0, 56
      %v33 = vstv %s32
      %v34 = vadd.s32 %v25, %v33
      %v35 = vadd.s32 %v26, %v33
      %v36 = vadd.s32 %v27, %v33
      %v37 = vadd.s32 %v28, %v33
      %v38 = vadd.s32 %v29, %v33
      %v39 = vadd.s32 %v30, %v33
      %v40 = vadd.s32 %v31, %v33
      %v41 = vlaneseq
      %v42 = vand.u32 %v41, 127
      %v43 = vcvt.s32.f32 %v42
      %v44 = vmul.f32 %v43, 0.021052632
      %v45 = vsub.f32 %v44, 1.0
      %v46 = vcvt.s32.f32 %v34
      %v47 = vcvt.s32.f32 %v35
      %v48 = vcvt.s32.f32 %v36
      %v49 = vcvt.s32.f32 %v37
      %v50 = vcvt.s32.f32 %v38
      %v51 = vcvt.s32.f32 %v39
      %v52 = vcvt.s32.f32 %v40
      %v53 = vmul.f32 %v46, 0.040816326
      %v54 = vmul.f32 %v47, 0.040816326
      %v55 = vmul.f32 %v48, 0.040816326
      %v56 = vmul.f32 %v49, 0.040816326
      %v57 = vmul.f32 %v50, 0.040816326
      %v58 = vmul.f32 %v51, 0.040816326
      %v59 = vmul.f32 %v52, 0.040816326
      %v60 = vsub.f32 %v53, 1.0
      %v61 = vsub.f32 %v54, 1.0
      %v62 = vsub.f32 %v55, 1.0
      %v63 = vsub.f32 %v56, 1.0
      %v64 = vsub.f32 %v57, 1.0
      %v65 = vsub.f32 %v58, 1.0
      %v66 = vsub.f32 %v59, 1.0
      %67 = vst [vmem:[#allocation3] sm:$0xff] %v45
      %68 = vst [vmem:[#allocation3 + $0x8] sm:$0xff] %v45
      %69 = vst [vmem:[#allocation3 + $0x10] sm:$0xff] %v45
      %70 = vst [vmem:[#allocation3 + $0x18] sm:$0xff] %v45
      %71 = vst [vmem:[#allocation3 + $0x20] sm:$0xff] %v45
      %72 = vst [vmem:[#allocation3 + $0x28] sm:$0xff] %v45
      %73 = vst [vmem:[#allocation3 + $0x30] sm:$0xff] %v45
      %74 = vst [vmem:[#allocation4] sm:$0xff] %v60
      %75 = vst [vmem:[#allocation4 + $0x8] sm:$0xff] %v61
      %76 = vst [vmem:[#allocation4 + $0x10] sm:$0xff] %v62
      %77 = vst [vmem:[#allocation4 + $0x18] sm:$0xff] %v63
      %78 = vst [vmem:[#allocation4 + $0x20] sm:$0xff] %v64
      %79 = vst [vmem:[#allocation4 + $0x28] sm:$0xff] %v65
      %80 = vst [vmem:[#allocation4 + $0x30] sm:$0xff] %v66
      %v81 = vsub.f32 %v45, -1.0
      %v82 = vsub.f32 %v60, -1.0
      %v83 = vsub.f32 %v61, -1.0
      %v84 = vsub.f32 %v62, -1.0
      %v85 = vsub.f32 %v63, -1.0
      %v86 = vsub.f32 %v64, -1.0
      %v87 = vsub.f32 %v65, -1.0
      %v88 = vsub.f32 %v66, -1.0
      %v89 = vmul.f32 %v81, %v81
      %v90 = vmul.f32 %v82, %v82
      %v91 = vmul.f32 %v83, %v83
      %v92 = vmul.f32 %v84, %v84
      %v93 = vmul.f32 %v85, %v85
      %v94 = vmul.f32 %v86, %v86
      %v95 = vmul.f32 %v87, %v87
      %v96 = vmul.f32 %v88, %v88
      %v97 = vadd.f32 %v89, %v90
      %v98 = vadd.f32 %v89, %v91
      %v99 = vadd.f32 %v89, %v92
      %v100 = vadd.f32 %v89, %v93
      %v101 = vadd.f32 %v89, %v94
      %v102 = vadd.f32 %v89, %v95
      %v103 = vadd.f32 %v89, %v96
      %vm104 = vcmp.eq.f32.partialorder %v97, 0.0
      %vm105 = vcmp.eq.f32.partialorder %v98, 0.0
      %vm106 = vcmp.eq.f32.partialorder %v99, 0.0
      %vm107 = vcmp.eq.f32.partialorder %v100, 0.0
      %vm108 = vcmp.eq.f32.partialorder %v101, 0.0
      %vm109 = vcmp.eq.f32.partialorder %v102, 0.0
      %vm110 = vcmp.eq.f32.partialorder %v103, 0.0
      %v111 = vsel %vm104, 1.0, %v97
      %v112 = vsel %vm105, 1.0, %v98
      %v113 = vsel %vm106, 1.0, %v99
      %v114 = vsel %vm107, 1.0, %v100
      %v115 = vsel %vm108, 1.0, %v101
      %v116 = vsel %vm109, 1.0, %v102
      %v117 = vsel %vm110, 1.0, %v103
      %v118 = vlog2.pop %v111
      %v119 = vmul.f32 %v118, 0.6931472
      %v120 = vlog2.pop %v112
      %v121 = vmul.f32 %v120, 0.6931472
      %v122 = vlog2.pop %v113
      %v123 = vmul.f32 %v122, 0.6931472
      %v124 = vlog2.pop %v114
      %v125 = vmul.f32 %v124, 0.6931472
      %v126 = vlog2.pop %v115
      %v127 = vmul.f32 %v126, 0.6931472
      %v128 = vlog2.pop %v116
      %v129 = vmul.f32 %v128, 0.6931472
      %v130 = vlog2.pop %v117
      %v131 = vmul.f32 %v130, 0.6931472
      %v132 = vmul.f32 %v111, %v119
      %v133 = vmul.f32 %v112, %v121
      %v134 = vmul.f32 %v113, %v123
      %v135 = vmul.f32 %v114, %v125
      %v136 = vmul.f32 %v115, %v127
      %v137 = vmul.f32 %v116, %v129
      %v138 = vmul.f32 %v117, %v131
      %139 = vst [vmem:[#allocation2] sm:$0xff] %v132
      %140 = vst [vmem:[#allocation2 + $0x8] sm:$0xff] %v133
      %141 = vst [vmem:[#allocation2 + $0x10] sm:$0xff] %v134
      %142 = vst [vmem:[#allocation2 + $0x18] sm:$0xff] %v135
      %143 = vst [vmem:[#allocation2 + $0x20] sm:$0xff] %v136
      %144 = vst [vmem:[#allocation2 + $0x28] sm:$0xff] %v137
      %145 = vst [vmem:[#allocation2 + $0x30] sm:$0xff] %v138
      %v146 = vmul.f32 %v60, %v60
      %v147 = vmul.f32 %v61, %v61
      %v148 = vmul.f32 %v62, %v62
      %v149 = vmul.f32 %v63, %v63
      %v150 = vmul.f32 %v64, %v64
      %v151 = vmul.f32 %v65, %v65
      %v152 = vmul.f32 %v66, %v66
      %v153 = vadd.f32 %v89, %v146
      %v154 = vadd.f32 %v89, %v147
      %v155 = vadd.f32 %v89, %v148
      %v156 = vadd.f32 %v89, %v149
      %v157 = vadd.f32 %v89, %v150
      %v158 = vadd.f32 %v89, %v151
      %v159 = vadd.f32 %v89, %v152
      %vm160 = vcmp.eq.f32.partialorder %v153, 0.0
      %vm161 = vcmp.eq.f32.partialorder %v154, 0.0
      %vm162 = vcmp.eq.f32.partialorder %v155, 0.0
      %vm163 = vcmp.eq.f32.partialorder %v156, 0.0
      %vm164 = vcmp.eq.f32.partialorder %v157, 0.0
      %vm165 = vcmp.eq.f32.partialorder %v158, 0.0
      %vm166 = vcmp.eq.f32.partialorder %v159, 0.0
      %v167 = vsel %vm160, 1.0, %v153
      %v168 = vsel %vm161, 1.0, %v154
      %v169 = vsel %vm162, 1.0, %v155
      %v170 = vsel %vm163, 1.0, %v156
      %v171 = vsel %vm164, 1.0, %v157
      %v172 = vsel %vm165, 1.0, %v158
      %v173 = vsel %vm166, 1.0, %v159
      %v174 = vlog2.pop %v167
      %v175 = vmul.f32 %v174, 0.6931472
      %v176 = vlog2.pop %v168
      %v177 = vmul.f32 %v176, 0.6931472
      %v178 = vlog2.pop %v169
      %v179 = vmul.f32 %v178, 0.6931472
      %v180 = vlog2.pop %v170
      %v181 = vmul.f32 %v180, 0.6931472
      %v182 = vlog2.pop %v171
      %v183 = vmul.f32 %v182, 0.6931472
      %v184 = vlog2.pop %v172
      %v185 = vmul.f32 %v184, 0.6931472
      %v186 = vlog2.pop %v173
      %v187 = vmul.f32 %v186, 0.6931472
      %v188 = vmul.f32 %v167, %v175
      %v189 = vmul.f32 %v168, %v177
      %v190 = vmul.f32 %v169, %v179
      %v191 = vmul.f32 %v170, %v181
      %v192 = vmul.f32 %v171, %v183
      %v193 = vmul.f32 %v172, %v185
      %v194 = vmul.f32 %v173, %v187
      %s195 = scalar_lea.vmem [#allocation2], 56
      %196 = vst [vmem:[%s195] sm:$0xff] %v188
      %197 = vst [vmem:[%s195 + $0x8] sm:$0xff] %v189
      %198 = vst [vmem:[%s195 + $0x10] sm:$0xff] %v190
      %199 = vst [vmem:[%s195 + $0x18] sm:$0xff] %v191
      %200 = vst [vmem:[%s195 + $0x20] sm:$0xff] %v192
      %201 = vst [vmem:[%s195 + $0x28] sm:$0xff] %v193
      %202 = vst [vmem:[%s195 + $0x30] sm:$0xff] %v194
      %v203 = vsub.f32 %v60, 1.0
      %v204 = vsub.f32 %v61, 1.0
      %v205 = vsub.f32 %v62, 1.0
      %v206 = vsub.f32 %v63, 1.0
      %v207 = vsub.f32 %v64, 1.0
      %v208 = vsub.f32 %v65, 1.0
      %v209 = vsub.f32 %v66, 1.0
      %v210 = vmul.f32 %v203, %v203
      %v211 = vmul.f32 %v204, %v204
      %v212 = vmul.f32 %v205, %v205
      %v213 = vmul.f32 %v206, %v206
      %v214 = vmul.f32 %v207, %v207
      %v215 = vmul.f32 %v208, %v208
      %v216 = vmul.f32 %v209, %v209
      %v217 = vadd.f32 %v89, %v210
      %v218 = vadd.f32 %v89, %v211
      %v219 = vadd.f32 %v89, %v212
      %v220 = vadd.f32 %v89, %v213
      %v221 = vadd.f32 %v89, %v214
      %v222 = vadd.f32 %v89, %v215
      %v223 = vadd.f32 %v89, %v216
      %vm224 = vcmp.eq.f32.partialorder %v217, 0.0
      %vm225 = vcmp.eq.f32.partialorder %v218, 0.0
      %vm226 = vcmp.eq.f32.partialorder %v219, 0.0
      %vm227 = vcmp.eq.f32.partialorder %v220, 0.0
      %vm228 = vcmp.eq.f32.partialorder %v221, 0.0
      %vm229 = vcmp.eq.f32.partialorder %v222, 0.0
      %vm230 = vcmp.eq.f32.partialorder %v223, 0.0
      %v231 = vsel %vm224, 1.0, %v217
      %v232 = vsel %vm225, 1.0, %v218
      %v233 = vsel %vm226, 1.0, %v219
      %v234 = vsel %vm227, 1.0, %v220
      %v235 = vsel %vm228, 1.0, %v221
      %v236 = vsel %vm229, 1.0, %v222
      %v237 = vsel %vm230, 1.0, %v223
      %v238 = vlog2.pop %v231
      %v239 = vmul.f32 %v238, 0.6931472
      %v240 = vlog2.pop %v232
      %v241 = vmul.f32 %v240, 0.6931472
      %v242 = vlog2.pop %v233
      %v243 = vmul.f32 %v242, 0.6931472
      %v244 = vlog2.pop %v234
      %v245 = vmul.f32 %v244, 0.6931472
      %v246 = vlog2.pop %v235
      %v247 = vmul.f32 %v246, 0.6931472
      %v248 = vlog2.pop %v236
      %v249 = vmul.f32 %v248, 0.6931472
      %v250 = vlog2.pop %v237
      %v251 = vmul.f32 %v250, 0.6931472
      %v252 = vmul.f32 %v231, %v239
      %v253 = vmul.f32 %v232, %v241
      %v254 = vmul.f32 %v233, %v243
      %v255 = vmul.f32 %v234, %v245
      %v256 = vmul.f32 %v235, %v247
      %v257 = vmul.f32 %v236, %v249
      %v258 = vmul.f32 %v237, %v251
      %s259 = scalar_lea.vmem [#allocation2], 112
      %260 = vst [vmem:[%s259] sm:$0xff] %v252
      %261 = vst [vmem:[%s259 + $0x8] sm:$0xff] %v253
      %262 = vst [vmem:[%s259 + $0x10] sm:$0xff] %v254
      %263 = vst [vmem:[%s259 + $0x18] sm:$0xff] %v255
      %264 = vst [vmem:[%s259 + $0x20] sm:$0xff] %v256
      %265 = vst [vmem:[%s259 + $0x28] sm:$0xff] %v257
      %266 = vst [vmem:[%s259 + $0x30] sm:$0xff] %v258
      %v267 = vmul.f32 %v45, %v45
      %v268 = vadd.f32 %v267, %v90
      %v269 = vadd.f32 %v267, %v91
      %v270 = vadd.f32 %v267, %v92
      %v271 = vadd.f32 %v267, %v93
      %v272 = vadd.f32 %v267, %v94
      %v273 = vadd.f32 %v267, %v95
      %v274 = vadd.f32 %v267, %v96
      %vm275 = vcmp.eq.f32.partialorder %v268, 0.0
      %vm276 = vcmp.eq.f32.partialorder %v269, 0.0
      %vm277 = vcmp.eq.f32.partialorder %v270, 0.0
      %vm278 = vcmp.eq.f32.partialorder %v271, 0.0
      %vm279 = vcmp.eq.f32.partialorder %v272, 0.0
      %vm280 = vcmp.eq.f32.partialorder %v273, 0.0
      %vm281 = vcmp.eq.f32.partialorder %v274, 0.0
      %v282 = vsel %vm275, 1.0, %v268
      %v283 = vsel %vm276, 1.0, %v269
      %v284 = vsel %vm277, 1.0, %v270
      %v285 = vsel %vm278, 1.0, %v271
      %v286 = vsel %vm279, 1.0, %v272
      %v287 = vsel %vm280, 1.0, %v273
      %v288 = vsel %vm281, 1.0, %v274
      %v289 = vlog2.pop %v282
      %v290 = vmul.f32 %v289, 0.6931472
      %v291 = vlog2.pop %v283
      %v292 = vmul.f32 %v291, 0.6931472
      %v293 = vlog2.pop %v284
      %v294 = vmul.f32 %v293, 0.6931472
      %v295 = vlog2.pop %v285
      %v296 = vmul.f32 %v295, 0.6931472
      %v297 = vlog2.pop %v286
      %v298 = vmul.f32 %v297, 0.6931472
      %v299 = vlog2.pop %v287
      %v300 = vmul.f32 %v299, 0.6931472
      %v301 = vlog2.pop %v288
      %v302 = vmul.f32 %v301, 0.6931472
      %v303 = vmul.f32 %v282, %v290
      %v304 = vmul.f32 %v283, %v292
      %v305 = vmul.f32 %v284, %v294
      %v306 = vmul.f32 %v285, %v296
      %v307 = vmul.f32 %v286, %v298
      %v308 = vmul.f32 %v287, %v300
      %v309 = vmul.f32 %v288, %v302
      %s310 = scalar_lea.vmem [#allocation2], 168
      %311 = vst [vmem:[%s310] sm:$0xff] %v303
      %312 = vst [vmem:[%s310 + $0x8] sm:$0xff] %v304
      %313 = vst [vmem:[%s310 + $0x10] sm:$0xff] %v305
      %314 = vst [vmem:[%s310 + $0x18] sm:$0xff] %v306
      %315 = vst [vmem:[%s310 + $0x20] sm:$0xff] %v307
      %316 = vst [vmem:[%s310 + $0x28] sm:$0xff] %v308
      %317 = vst [vmem:[%s310 + $0x30] sm:$0xff] %v309
      %v318 = vadd.f32 %v267, %v146
      %v319 = vadd.f32 %v267, %v147
      %v320 = vadd.f32 %v267, %v148
      %v321 = vadd.f32 %v267, %v149
      %v322 = vadd.f32 %v267, %v150
      %v323 = vadd.f32 %v267, %v151
      %v324 = vadd.f32 %v267, %v152
      %vm325 = vcmp.eq.f32.partialorder %v318, 0.0
      %vm326 = vcmp.eq.f32.partialorder %v319, 0.0
      %vm327 = vcmp.eq.f32.partialorder %v320, 0.0
      %vm328 = vcmp.eq.f32.partialorder %v321, 0.0
      %vm329 = vcmp.eq.f32.partialorder %v322, 0.0
      %vm330 = vcmp.eq.f32.partialorder %v323, 0.0
      %vm331 = vcmp.eq.f32.partialorder %v324, 0.0
      %v332 = vsel %vm325, 1.0, %v318
      %v333 = vsel %vm326, 1.0, %v319
      %v334 = vsel %vm327, 1.0, %v320
      %v335 = vsel %vm328, 1.0, %v321
      %v336 = vsel %vm329, 1.0, %v322
      %v337 = vsel %vm330, 1.0, %v323
      %v338 = vsel %vm331, 1.0, %v324
      %v339 = vlog2.pop %v332
      %v340 = vmul.f32 %v339, 0.6931472
      %v341 = vlog2.pop %v333
      %v342 = vmul.f32 %v341, 0.6931472
      %v343 = vlog2.pop %v334
      %v344 = vmul.f32 %v343, 0.6931472
      %v345 = vlog2.pop %v335
      %v346 = vmul.f32 %v345, 0.6931472
      %v347 = vlog2.pop %v336
      %v348 = vmul.f32 %v347, 0.6931472
      %v349 = vlog2.pop %v337
      %v350 = vmul.f32 %v349, 0.6931472
      %v351 = vlog2.pop %v338
      %v352 = vmul.f32 %v351, 0.6931472
      %v353 = vmul.f32 %v332, %v340
      %v354 = vmul.f32 %v333, %v342
      %v355 = vmul.f32 %v334, %v344
      %v356 = vmul.f32 %v335, %v346
      %v357 = vmul.f32 %v336, %v348
      %v358 = vmul.f32 %v337, %v350
      %v359 = vmul.f32 %v338, %v352
      %s360 = scalar_lea.vmem [#allocation2], 224
      %361 = vst [vmem:[%s360] sm:$0xff] %v353
      %362 = vst [vmem:[%s360 + $0x8] sm:$0xff] %v354
      %363 = vst [vmem:[%s360 + $0x10] sm:$0xff] %v355
      %364 = vst [vmem:[%s360 + $0x18] sm:$0xff] %v356
      %365 = vst [vmem:[%s360 + $0x20] sm:$0xff] %v357
      %366 = vst [vmem:[%s360 + $0x28] sm:$0xff] %v358
      %367 = vst [vmem:[%s360 + $0x30] sm:$0xff] %v359
      %v368 = vadd.f32 %v267, %v210
      %v369 = vadd.f32 %v267, %v211
      %v370 = vadd.f32 %v267, %v212
      %v371 = vadd.f32 %v267, %v213
      %v372 = vadd.f32 %v267, %v214
      %v373 = vadd.f32 %v267, %v215
      %v374 = vadd.f32 %v267, %v216
      %vm375 = vcmp.eq.f32.partialorder %v368, 0.0
      %vm376 = vcmp.eq.f32.partialorder %v369, 0.0
      %vm377 = vcmp.eq.f32.partialorder %v370, 0.0
      %vm378 = vcmp.eq.f32.partialorder %v371, 0.0
      %vm379 = vcmp.eq.f32.partialorder %v372, 0.0
      %vm380 = vcmp.eq.f32.partialorder %v373, 0.0
      %vm381 = vcmp.eq.f32.partialorder %v374, 0.0
      %v382 = vsel %vm375, 1.0, %v368
      %v383 = vsel %vm376, 1.0, %v369
      %v384 = vsel %vm377, 1.0, %v370
      %v385 = vsel %vm378, 1.0, %v371
      %v386 = vsel %vm379, 1.0, %v372
      %v387 = vsel %vm380, 1.0, %v373
      %v388 = vsel %vm381, 1.0, %v374
      %v389 = vlog2.pop %v382
      %v390 = vmul.f32 %v389, 0.6931472
      %v391 = vlog2.pop %v383
      %v392 = vmul.f32 %v391, 0.6931472
      %v393 = vlog2.pop %v384
      %v394 = vmul.f32 %v393, 0.6931472
      %v395 = vlog2.pop %v385
      %v396 = vmul.f32 %v395, 0.6931472
      %v397 = vlog2.pop %v386
      %v398 = vmul.f32 %v397, 0.6931472
      %v399 = vlog2.pop %v387
      %v400 = vmul.f32 %v399, 0.6931472
      %v401 = vlog2.pop %v388
      %v402 = vmul.f32 %v401, 0.6931472
      %v403 = vmul.f32 %v382, %v390
      %v404 = vmul.f32 %v383, %v392
      %v405 = vmul.f32 %v384, %v394
      %v406 = vmul.f32 %v385, %v396
      %v407 = vmul.f32 %v386, %v398
      %v408 = vmul.f32 %v387, %v400
      %v409 = vmul.f32 %v388, %v402
      %s410 = scalar_lea.vmem [#allocation2], 280
      %411 = vst [vmem:[%s410] sm:$0xff] %v403
      %412 = vst [vmem:[%s410 + $0x8] sm:$0xff] %v404
      %413 = vst [vmem:[%s410 + $0x10] sm:$0xff] %v405
      %414 = vst [vmem:[%s410 + $0x18] sm:$0xff] %v406
      %415 = vst [vmem:[%s410 + $0x20] sm:$0xff] %v407
      %416 = vst [vmem:[%s410 + $0x28] sm:$0xff] %v408
      %417 = vst [vmem:[%s410 + $0x30] sm:$0xff] %v409
      %v418 = vsub.f32 %v45, 1.0
      %v419 = vmul.f32 %v418, %v418
      %v420 = vadd.f32 %v419, %v90
      %v421 = vadd.f32 %v419, %v91
      %v422 = vadd.f32 %v419, %v92
      %v423 = vadd.f32 %v419, %v93
      %v424 = vadd.f32 %v419, %v94
      %v425 = vadd.f32 %v419, %v95
      %v426 = vadd.f32 %v419, %v96
      %vm427 = vcmp.eq.f32.partialorder %v420, 0.0
      %vm428 = vcmp.eq.f32.partialorder %v421, 0.0
      %vm429 = vcmp.eq.f32.partialorder %v422, 0.0
      %vm430 = vcmp.eq.f32.partialorder %v423, 0.0
      %vm431 = vcmp.eq.f32.partialorder %v424, 0.0
      %vm432 = vcmp.eq.f32.partialorder %v425, 0.0
      %vm433 = vcmp.eq.f32.partialorder %v426, 0.0
      %v434 = vsel %vm427, 1.0, %v420
      %v435 = vsel %vm428, 1.0, %v421
      %v436 = vsel %vm429, 1.0, %v422
      %v437 = vsel %vm430, 1.0, %v423
      %v438 = vsel %vm431, 1.0, %v424
      %v439 = vsel %vm432, 1.0, %v425
      %v440 = vsel %vm433, 1.0, %v426
      %v441 = vlog2.pop %v434
      %v442 = vmul.f32 %v441, 0.6931472
      %v443 = vlog2.pop %v435
      %v444 = vmul.f32 %v443, 0.6931472
      %v445 = vlog2.pop %v436
      %v446 = vmul.f32 %v445, 0.6931472
      %v447 = vlog2.pop %v437
      %v448 = vmul.f32 %v447, 0.6931472
      %v449 = vlog2.pop %v438
      %v450 = vmul.f32 %v449, 0.6931472
      %v451 = vlog2.pop %v439
      %v452 = vmul.f32 %v451, 0.6931472
      %v453 = vlog2.pop %v440
      %v454 = vmul.f32 %v453, 0.6931472
      %v455 = vmul.f32 %v434, %v442
      %v456 = vmul.f32 %v435, %v444
      %v457 = vmul.f32 %v436, %v446
      %v458 = vmul.f32 %v437, %v448
      %v459 = vmul.f32 %v438, %v450
      %v460 = vmul.f32 %v439, %v452
      %v461 = vmul.f32 %v440, %v454
      %s462 = scalar_lea.vmem [#allocation2], 336
      %463 = vst [vmem:[%s462] sm:$0xff] %v455
      %464 = vst [vmem:[%s462 + $0x8] sm:$0xff] %v456
      %465 = vst [vmem:[%s462 + $0x10] sm:$0xff] %v457
      %466 = vst [vmem:[%s462 + $0x18] sm:$0xff] %v458
      %467 = vst [vmem:[%s462 + $0x20] sm:$0xff] %v459
      %468 = vst [vmem:[%s462 + $0x28] sm:$0xff] %v460
      %469 = vst [vmem:[%s462 + $0x30] sm:$0xff] %v461
      %v470 = vadd.f32 %v419, %v146
      %v471 = vadd.f32 %v419, %v147
      %v472 = vadd.f32 %v419, %v148
      %v473 = vadd.f32 %v419, %v149
      %v474 = vadd.f32 %v419, %v150
      %v475 = vadd.f32 %v419, %v151
      %v476 = vadd.f32 %v419, %v152
      %vm477 = vcmp.eq.f32.partialorder %v470, 0.0
      %vm478 = vcmp.eq.f32.partialorder %v471, 0.0
      %vm479 = vcmp.eq.f32.partialorder %v472, 0.0
      %vm480 = vcmp.eq.f32.partialorder %v473, 0.0
      %vm481 = vcmp.eq.f32.partialorder %v474, 0.0
      %vm482 = vcmp.eq.f32.partialorder %v475, 0.0
      %vm483 = vcmp.eq.f32.partialorder %v476, 0.0
      %v484 = vsel %vm477, 1.0, %v470
      %v485 = vsel %vm478, 1.0, %v471
      %v486 = vsel %vm479, 1.0, %v472
      %v487 = vsel %vm480, 1.0, %v473
      %v488 = vsel %vm481, 1.0, %v474
      %v489 = vsel %vm482, 1.0, %v475
      %v490 = vsel %vm483, 1.0, %v476
      %v491 = vlog2.pop %v484
      %v492 = vmul.f32 %v491, 0.6931472
      %v493 = vlog2.pop %v485
      %v494 = vmul.f32 %v493, 0.6931472
      %v495 = vlog2.pop %v486
      %v496 = vmul.f32 %v495, 0.6931472
      %v497 = vlog2.pop %v487
      %v498 = vmul.f32 %v497, 0.6931472
      %v499 = vlog2.pop %v488
      %v500 = vmul.f32 %v499, 0.6931472
      %v501 = vlog2.pop %v489
      %v502 = vmul.f32 %v501, 0.6931472
      %v503 = vlog2.pop %v490
      %v504 = vmul.f32 %v503, 0.6931472
      %v505 = vmul.f32 %v484, %v492
      %v506 = vmul.f32 %v485, %v494
      %v507 = vmul.f32 %v486, %v496
      %v508 = vmul.f32 %v487, %v498
      %v509 = vmul.f32 %v488, %v500
      %v510 = vmul.f32 %v489, %v502
      %v511 = vmul.f32 %v490, %v504
      %s512 = scalar_lea.vmem [#allocation2], 392
      %513 = vst [vmem:[%s512] sm:$0xff] %v505
      %514 = vst [vmem:[%s512 + $0x8] sm:$0xff] %v506
      %515 = vst [vmem:[%s512 + $0x10] sm:$0xff] %v507
      %516 = vst [vmem:[%s512 + $0x18] sm:$0xff] %v508
      %517 = vst [vmem:[%s512 + $0x20] sm:$0xff] %v509
      %518 = vst [vmem:[%s512 + $0x28] sm:$0xff] %v510
      %519 = vst [vmem:[%s512 + $0x30] sm:$0xff] %v511
      %v520 = vadd.f32 %v419, %v210
      %v521 = vadd.f32 %v419, %v211
      %v522 = vadd.f32 %v419, %v212
      %v523 = vadd.f32 %v419, %v213
      %v524 = vadd.f32 %v419, %v214
      %v525 = vadd.f32 %v419, %v215
      %v526 = vadd.f32 %v419, %v216
      %vm527 = vcmp.eq.f32.partialorder %v520, 0.0
      %vm528 = vcmp.eq.f32.partialorder %v521, 0.0
      %vm529 = vcmp.eq.f32.partialorder %v522, 0.0
      %vm530 = vcmp.eq.f32.partialorder %v523, 0.0
      %vm531 = vcmp.eq.f32.partialorder %v524, 0.0
      %vm532 = vcmp.eq.f32.partialorder %v525, 0.0
      %vm533 = vcmp.eq.f32.partialorder %v526, 0.0
      %v534 = vsel %vm527, 1.0, %v520
      %v535 = vsel %vm528, 1.0, %v521
      %v536 = vsel %vm529, 1.0, %v522
      %v537 = vsel %vm530, 1.0, %v523
      %v538 = vsel %vm531, 1.0, %v524
      %v539 = vsel %vm532, 1.0, %v525
      %v540 = vsel %vm533, 1.0, %v526
      %v541 = vlog2.pop %v534
      %v542 = vmul.f32 %v541, 0.6931472
      %v543 = vlog2.pop %v535
      %v544 = vmul.f32 %v543, 0.6931472
      %v545 = vlog2.pop %v536
      %v546 = vmul.f32 %v545, 0.6931472
      %v547 = vlog2.pop %v537
      %v548 = vmul.f32 %v547, 0.6931472
      %v549 = vlog2.pop %v538
      %v550 = vmul.f32 %v549, 0.6931472
      %v551 = vlog2.pop %v539
      %v552 = vmul.f32 %v551, 0.6931472
      %v553 = vlog2.pop %v540
      %v554 = vmul.f32 %v553, 0.6931472
      %v555 = vmul.f32 %v534, %v542
      %v556 = vmul.f32 %v535, %v544
      %v557 = vmul.f32 %v536, %v546
      %v558 = vmul.f32 %v537, %v548
      %v559 = vmul.f32 %v538, %v550
      %v560 = vmul.f32 %v539, %v552
      %v561 = vmul.f32 %v540, %v554
      %s562 = scalar_lea.vmem [#allocation2], 448
      %563 = vst [vmem:[%s562] sm:$0xff] %v555
      %564 = vst [vmem:[%s562 + $0x8] sm:$0xff] %v556
      %565 = vst [vmem:[%s562 + $0x10] sm:$0xff] %v557
      %566 = vst [vmem:[%s562 + $0x18] sm:$0xff] %v558
      %567 = vst [vmem:[%s562 + $0x20] sm:$0xff] %v559
      %568 = vst [vmem:[%s562 + $0x28] sm:$0xff] %v560
      %569 = vst [vmem:[%s562 + $0x30] sm:$0xff] %v561
    $region13: #{tpu_custom_call.1} parent=1 // pred_fallthru
      _
    %v570 = vld [vmem:[#allocation3] sm:$0xff]
    %v571 = vld [vmem:[#allocation3 + $0x8] sm:$0xff]
    %v572 = vld [vmem:[#allocation3 + $0x10] sm:$0xff]
    %v573 = vld [vmem:[#allocation3 + $0x18] sm:$0xff]
    %v574 = vld [vmem:[#allocation3 + $0x20] sm:$0xff]
    %v575 = vld [vmem:[#allocation3 + $0x28] sm:$0xff]
    %v576 = vld [vmem:[#allocation3 + $0x30] sm:$0xff]
    %v577 = vld [vmem:[#allocation4] sm:$0xff]
    %v578 = vld [vmem:[#allocation4 + $0x8] sm:$0xff]
    %v579 = vld [vmem:[#allocation4 + $0x10] sm:$0xff]
    %v580 = vld [vmem:[#allocation4 + $0x18] sm:$0xff]
    %v581 = vld [vmem:[#allocation4 + $0x20] sm:$0xff]
    %v582 = vld [vmem:[#allocation4 + $0x28] sm:$0xff]
    %v583 = vld [vmem:[#allocation4 + $0x30] sm:$0xff]
    %s584 = smul.u32 0, 2
    %s585 = smul.u32 0, 48
    %s586 = sld [smem:[#allocation5 + %s585]]
    %s587 = sadd.s32 %s585, 1
    %s588 = sld [smem:[#allocation5 + %s587]]
    %v589 = vstv %s588
    %v590 = vmul.f32 %v589, %v570
    %v591 = vmul.f32 %v589, %v571
    %v592 = vmul.f32 %v589, %v572
    %v593 = vmul.f32 %v589, %v573
    %v594 = vmul.f32 %v589, %v574
    %v595 = vmul.f32 %v589, %v575
    %v596 = vmul.f32 %v589, %v576
    %v597 = vstv %s586
    %v598 = vadd.f32 %v597, %v590
    %v599 = vadd.f32 %v597, %v591
    %v600 = vadd.f32 %v597, %v592
    %v601 = vadd.f32 %v597, %v593
    %v602 = vadd.f32 %v597, %v594
    %v603 = vadd.f32 %v597, %v595
    %v604 = vadd.f32 %v597, %v596
    %s605 = sadd.s32 %s585, 2
    %s606 = sld [smem:[#allocation5 + %s605]]
    %v607 = vstv %s606
    %v608 = vmul.f32 %v607, %v577
    %v609 = vmul.f32 %v607, %v578
    %v610 = vmul.f32 %v607, %v579
    %v611 = vmul.f32 %v607, %v580
    %v612 = vmul.f32 %v607, %v581
    %v613 = vmul.f32 %v607, %v582
    %v614 = vmul.f32 %v607, %v583
    %v615 = vadd.f32 %v598, %v608
    %v616 = vadd.f32 %v599, %v609
    %v617 = vadd.f32 %v600, %v610
    %v618 = vadd.f32 %v601, %v611
    %v619 = vadd.f32 %v602, %v612
    %v620 = vadd.f32 %v603, %v613
    %v621 = vadd.f32 %v604, %v614
    %s622 = smul.u32 0, 4
    %s623 = sadd.s32 %s622, 1
    %s624 = smul.u32 %s623, 12
    %s625 = sld [smem:[#allocation5 + %s624]]
    %s626 = sadd.s32 %s624, 1
    %s627 = sld [smem:[#allocation5 + %s626]]
    %v628 = vstv %s627
    %v629 = vmul.f32 %v628, %v570
    %v630 = vmul.f32 %v628, %v571
    %v631 = vmul.f32 %v628, %v572
    %v632 = vmul.f32 %v628, %v573
    %v633 = vmul.f32 %v628, %v574
    %v634 = vmul.f32 %v628, %v575
    %v635 = vmul.f32 %v628, %v576
    %v636 = vstv %s625
    %v637 = vadd.f32 %v636, %v629
    %v638 = vadd.f32 %v636, %v630
    %v639 = vadd.f32 %v636, %v631
    %v640 = vadd.f32 %v636, %v632
    %v641 = vadd.f32 %v636, %v633
    %v642 = vadd.f32 %v636, %v634
    %v643 = vadd.f32 %v636, %v635
    %s644 = sadd.s32 %s624, 2
    %s645 = sld [smem:[#allocation5 + %s644]]
    %v646 = vstv %s645
    %v647 = vmul.f32 %v646, %v577
    %v648 = vmul.f32 %v646, %v578
    %v649 = vmul.f32 %v646, %v579
    %v650 = vmul.f32 %v646, %v580
    %v651 = vmul.f32 %v646, %v581
    %v652 = vmul.f32 %v646, %v582
    %v653 = vmul.f32 %v646, %v583
    %v654 = vadd.f32 %v637, %v647
    %v655 = vadd.f32 %v638, %v648
    %v656 = vadd.f32 %v639, %v649
    %v657 = vadd.f32 %v640, %v650
    %v658 = vadd.f32 %v641, %v651
    %v659 = vadd.f32 %v642, %v652
    %v660 = vadd.f32 %v643, %v653
    %s661 = sadd.s32 %s584, 1
    %s662 = smul.u32 %s661, 24
    %s663 = sld [smem:[#allocation5 + %s662]]
    %s664 = sadd.s32 %s662, 1
    %s665 = sld [smem:[#allocation5 + %s664]]
    %v666 = vstv %s665
    %v667 = vmul.f32 %v666, %v570
    %v668 = vmul.f32 %v666, %v571
    %v669 = vmul.f32 %v666, %v572
    %v670 = vmul.f32 %v666, %v573
    %v671 = vmul.f32 %v666, %v574
    %v672 = vmul.f32 %v666, %v575
    %v673 = vmul.f32 %v666, %v576
    %v674 = vstv %s663
    %v675 = vadd.f32 %v674, %v667
    %v676 = vadd.f32 %v674, %v668
    %v677 = vadd.f32 %v674, %v669
    %v678 = vadd.f32 %v674, %v670
    %v679 = vadd.f32 %v674, %v671
    %v680 = vadd.f32 %v674, %v672
    %v681 = vadd.f32 %v674, %v673
    %s682 = sadd.s32 %s662, 2
    %s683 = sld [smem:[#allocation5 + %s682]]
    %v684 = vstv %s683
    %v685 = vmul.f32 %v684, %v577
    %v686 = vmul.f32 %v684, %v578
    %v687 = vmul.f32 %v684, %v579
    %v688 = vmul.f32 %v684, %v580
    %v689 = vmul.f32 %v684, %v581
    %v690 = vmul.f32 %v684, %v582
    %v691 = vmul.f32 %v684, %v583
    %v692 = vadd.f32 %v675, %v685
    %v693 = vadd.f32 %v676, %v686
    %v694 = vadd.f32 %v677, %v687
    %v695 = vadd.f32 %v678, %v688
    %v696 = vadd.f32 %v679, %v689
    %v697 = vadd.f32 %v680, %v690
    %v698 = vadd.f32 %v681, %v691
    %s699 = smul.u32 %s661, 2
    %s700 = sadd.s32 %s699, 1
    %s701 = smul.u32 %s700, 12
    %s702 = sld [smem:[#allocation5 + %s701]]
    %s703 = sadd.s32 %s701, 1
    %s704 = sld [smem:[#allocation5 + %s703]]
    %v705 = vstv %s704
    %v706 = vmul.f32 %v705, %v570
    %v707 = vmul.f32 %v705, %v571
    %v708 = vmul.f32 %v705, %v572
    %v709 = vmul.f32 %v705, %v573
    %v710 = vmul.f32 %v705, %v574
    %v711 = vmul.f32 %v705, %v575
    %v712 = vmul.f32 %v705, %v576
    %v713 = vstv %s702
    %v714 = vadd.f32 %v713, %v706
    %v715 = vadd.f32 %v713, %v707
    %v716 = vadd.f32 %v713, %v708
    %v717 = vadd.f32 %v713, %v709
    %v718 = vadd.f32 %v713, %v710
    %v719 = vadd.f32 %v713, %v711
    %v720 = vadd.f32 %v713, %v712
    %s721 = sadd.s32 %s701, 2
    %s722 = sld [smem:[#allocation5 + %s721]]
    %v723 = vstv %s722
    %v724 = vmul.f32 %v723, %v577
    %v725 = vmul.f32 %v723, %v578
    %v726 = vmul.f32 %v723, %v579
    %v727 = vmul.f32 %v723, %v580
    %v728 = vmul.f32 %v723, %v581
    %v729 = vmul.f32 %v723, %v582
    %v730 = vmul.f32 %v723, %v583
    %v731 = vadd.f32 %v714, %v724
    %v732 = vadd.f32 %v715, %v725
    %v733 = vadd.f32 %v716, %v726
    %v734 = vadd.f32 %v717, %v727
    %v735 = vadd.f32 %v718, %v728
    %v736 = vadd.f32 %v719, %v729
    %v737 = vadd.f32 %v720, %v730
    %v738 = vld [vmem:[#allocation2] sm:$0xff]
    %v739 = vld [vmem:[#allocation2 + $0x8] sm:$0xff]
    %v740 = vld [vmem:[#allocation2 + $0x10] sm:$0xff]
    %v741 = vld [vmem:[#allocation2 + $0x18] sm:$0xff]
    %v742 = vld [vmem:[#allocation2 + $0x20] sm:$0xff]
    %v743 = vld [vmem:[#allocation2 + $0x28] sm:$0xff]
    %v744 = vld [vmem:[#allocation2 + $0x30] sm:$0xff]
    %s745 = sadd.s32 %s585, 3
    %s746 = sld [smem:[#allocation5 + %s745]]
    %v747 = vstv %s746
    %v748 = vmul.f32 %v747, %v738
    %v749 = vmul.f32 %v747, %v739
    %v750 = vmul.f32 %v747, %v740
    %v751 = vmul.f32 %v747, %v741
    %v752 = vmul.f32 %v747, %v742
    %v753 = vmul.f32 %v747, %v743
    %v754 = vmul.f32 %v747, %v744
    %v755 = vadd.f32 %v615, %v748
    %v756 = vadd.f32 %v616, %v749
    %v757 = vadd.f32 %v617, %v750
    %v758 = vadd.f32 %v618, %v751
    %v759 = vadd.f32 %v619, %v752
    %v760 = vadd.f32 %v620, %v753
    %v761 = vadd.f32 %v621, %v754
    %s762 = sadd.s32 %s624, 3
    %s763 = sld [smem:[#allocation5 + %s762]]
    %v764 = vstv %s763
    %v765 = vmul.f32 %v764, %v738
    %v766 = vmul.f32 %v764, %v739
    %v767 = vmul.f32 %v764, %v740
    %v768 = vmul.f32 %v764, %v741
    %v769 = vmul.f32 %v764, %v742
    %v770 = vmul.f32 %v764, %v743
    %v771 = vmul.f32 %v764, %v744
    %v772 = vadd.f32 %v654, %v765
    %v773 = vadd.f32 %v655, %v766
    %v774 = vadd.f32 %v656, %v767
    %v775 = vadd.f32 %v657, %v768
    %v776 = vadd.f32 %v658, %v769
    %v777 = vadd.f32 %v659, %v770
    %v778 = vadd.f32 %v660, %v771
    %s779 = sadd.s32 %s662, 3
    %s780 = sld [smem:[#allocation5 + %s779]]
    %v781 = vstv %s780
    %v782 = vmul.f32 %v781, %v738
    %v783 = vmul.f32 %v781, %v739
    %v784 = vmul.f32 %v781, %v740
    %v785 = vmul.f32 %v781, %v741
    %v786 = vmul.f32 %v781, %v742
    %v787 = vmul.f32 %v781, %v743
    %v788 = vmul.f32 %v781, %v744
    %v789 = vadd.f32 %v692, %v782
    %v790 = vadd.f32 %v693, %v783
    %v791 = vadd.f32 %v694, %v784
    %v792 = vadd.f32 %v695, %v785
    %v793 = vadd.f32 %v696, %v786
    %v794 = vadd.f32 %v697, %v787
    %v795 = vadd.f32 %v698, %v788
    %s796 = sadd.s32 %s701, 3
    %s797 = sld [smem:[#allocation5 + %s796]]
    %v798 = vstv %s797
    %v799 = vmul.f32 %v798, %v738
    %v800 = vmul.f32 %v798, %v739
    %v801 = vmul.f32 %v798, %v740
    %v802 = vmul.f32 %v798, %v741
    %v803 = vmul.f32 %v798, %v742
    %v804 = vmul.f32 %v798, %v743
    %v805 = vmul.f32 %v798, %v744
    %v806 = vadd.f32 %v731, %v799
    %v807 = vadd.f32 %v732, %v800
    %v808 = vadd.f32 %v733, %v801
    %v809 = vadd.f32 %v734, %v802
    %v810 = vadd.f32 %v735, %v803
    %v811 = vadd.f32 %v736, %v804
    %v812 = vadd.f32 %v737, %v805
    %s813 = scalar_lea.vmem [#allocation2], 56
    %v814 = vld [vmem:[%s813] sm:$0xff]
    %v815 = vld [vmem:[%s813 + $0x8] sm:$0xff]
    %v816 = vld [vmem:[%s813 + $0x10] sm:$0xff]
    %v817 = vld [vmem:[%s813 + $0x18] sm:$0xff]
    %v818 = vld [vmem:[%s813 + $0x20] sm:$0xff]
    %v819 = vld [vmem:[%s813 + $0x28] sm:$0xff]
    %v820 = vld [vmem:[%s813 + $0x30] sm:$0xff]
    %s821 = sadd.s32 %s585, 4
    %s822 = sld [smem:[#allocation5 + %s821]]
    %v823 = vstv %s822
    %v824 = vmul.f32 %v823, %v814
    %v825 = vmul.f32 %v823, %v815
    %v826 = vmul.f32 %v823, %v816
    %v827 = vmul.f32 %v823, %v817
    %v828 = vmul.f32 %v823, %v818
    %v829 = vmul.f32 %v823, %v819
    %v830 = vmul.f32 %v823, %v820
    %v831 = vadd.f32 %v755, %v824
    %v832 = vadd.f32 %v756, %v825
    %v833 = vadd.f32 %v757, %v826
    %v834 = vadd.f32 %v758, %v827
    %v835 = vadd.f32 %v759, %v828
    %v836 = vadd.f32 %v760, %v829
    %v837 = vadd.f32 %v761, %v830
    %s838 = sadd.s32 %s624, 4
    %s839 = sld [smem:[#allocation5 + %s838]]
    %v840 = vstv %s839
    %v841 = vmul.f32 %v840, %v814
    %v842 = vmul.f32 %v840, %v815
    %v843 = vmul.f32 %v840, %v816
    %v844 = vmul.f32 %v840, %v817
    %v845 = vmul.f32 %v840, %v818
    %v846 = vmul.f32 %v840, %v819
    %v847 = vmul.f32 %v840, %v820
    %v848 = vadd.f32 %v772, %v841
    %v849 = vadd.f32 %v773, %v842
    %v850 = vadd.f32 %v774, %v843
    %v851 = vadd.f32 %v775, %v844
    %v852 = vadd.f32 %v776, %v845
    %v853 = vadd.f32 %v777, %v846
    %v854 = vadd.f32 %v778, %v847
    %s855 = sadd.s32 %s662, 4
    %s856 = sld [smem:[#allocation5 + %s855]]
    %v857 = vstv %s856
    %v858 = vmul.f32 %v857, %v814
    %v859 = vmul.f32 %v857, %v815
    %v860 = vmul.f32 %v857, %v816
    %v861 = vmul.f32 %v857, %v817
    %v862 = vmul.f32 %v857, %v818
    %v863 = vmul.f32 %v857, %v819
    %v864 = vmul.f32 %v857, %v820
    %v865 = vadd.f32 %v789, %v858
    %v866 = vadd.f32 %v790, %v859
    %v867 = vadd.f32 %v791, %v860
    %v868 = vadd.f32 %v792, %v861
    %v869 = vadd.f32 %v793, %v862
    %v870 = vadd.f32 %v794, %v863
    %v871 = vadd.f32 %v795, %v864
    %s872 = sadd.s32 %s701, 4
    %s873 = sld [smem:[#allocation5 + %s872]]
    %v874 = vstv %s873
    %v875 = vmul.f32 %v874, %v814
    %v876 = vmul.f32 %v874, %v815
    %v877 = vmul.f32 %v874, %v816
    %v878 = vmul.f32 %v874, %v817
    %v879 = vmul.f32 %v874, %v818
    %v880 = vmul.f32 %v874, %v819
    %v881 = vmul.f32 %v874, %v820
    %v882 = vadd.f32 %v806, %v875
    %v883 = vadd.f32 %v807, %v876
    %v884 = vadd.f32 %v808, %v877
    %v885 = vadd.f32 %v809, %v878
    %v886 = vadd.f32 %v810, %v879
    %v887 = vadd.f32 %v811, %v880
    %v888 = vadd.f32 %v812, %v881
    %s889 = scalar_lea.vmem [#allocation2], 112
    %v890 = vld [vmem:[%s889] sm:$0xff]
    %v891 = vld [vmem:[%s889 + $0x8] sm:$0xff]
    %v892 = vld [vmem:[%s889 + $0x10] sm:$0xff]
    %v893 = vld [vmem:[%s889 + $0x18] sm:$0xff]
    %v894 = vld [vmem:[%s889 + $0x20] sm:$0xff]
    %v895 = vld [vmem:[%s889 + $0x28] sm:$0xff]
    %v896 = vld [vmem:[%s889 + $0x30] sm:$0xff]
    %s897 = sadd.s32 %s585, 5
    %s898 = sld [smem:[#allocation5 + %s897]]
    %v899 = vstv %s898
    %v900 = vmul.f32 %v899, %v890
    %v901 = vmul.f32 %v899, %v891
    %v902 = vmul.f32 %v899, %v892
    %v903 = vmul.f32 %v899, %v893
    %v904 = vmul.f32 %v899, %v894
    %v905 = vmul.f32 %v899, %v895
    %v906 = vmul.f32 %v899, %v896
    %v907 = vadd.f32 %v831, %v900
    %v908 = vadd.f32 %v832, %v901
    %v909 = vadd.f32 %v833, %v902
    %v910 = vadd.f32 %v834, %v903
    %v911 = vadd.f32 %v835, %v904
    %v912 = vadd.f32 %v836, %v905
    %v913 = vadd.f32 %v837, %v906
    %s914 = sadd.s32 %s624, 5
    %s915 = sld [smem:[#allocation5 + %s914]]
    %v916 = vstv %s915
    %v917 = vmul.f32 %v916, %v890
    %v918 = vmul.f32 %v916, %v891
    %v919 = vmul.f32 %v916, %v892
    %v920 = vmul.f32 %v916, %v893
    %v921 = vmul.f32 %v916, %v894
    %v922 = vmul.f32 %v916, %v895
    %v923 = vmul.f32 %v916, %v896
    %v924 = vadd.f32 %v848, %v917
    %v925 = vadd.f32 %v849, %v918
    %v926 = vadd.f32 %v850, %v919
    %v927 = vadd.f32 %v851, %v920
    %v928 = vadd.f32 %v852, %v921
    %v929 = vadd.f32 %v853, %v922
    %v930 = vadd.f32 %v854, %v923
    %s931 = sadd.s32 %s662, 5
    %s932 = sld [smem:[#allocation5 + %s931]]
    %v933 = vstv %s932
    %v934 = vmul.f32 %v933, %v890
    %v935 = vmul.f32 %v933, %v891
    %v936 = vmul.f32 %v933, %v892
    %v937 = vmul.f32 %v933, %v893
    %v938 = vmul.f32 %v933, %v894
    %v939 = vmul.f32 %v933, %v895
    %v940 = vmul.f32 %v933, %v896
    %v941 = vadd.f32 %v865, %v934
    %v942 = vadd.f32 %v866, %v935
    %v943 = vadd.f32 %v867, %v936
    %v944 = vadd.f32 %v868, %v937
    %v945 = vadd.f32 %v869, %v938
    %v946 = vadd.f32 %v870, %v939
    %v947 = vadd.f32 %v871, %v940
    %s948 = sadd.s32 %s701, 5
    %s949 = sld [smem:[#allocation5 + %s948]]
    %v950 = vstv %s949
    %v951 = vmul.f32 %v950, %v890
    %v952 = vmul.f32 %v950, %v891
    %v953 = vmul.f32 %v950, %v892
    %v954 = vmul.f32 %v950, %v893
    %v955 = vmul.f32 %v950, %v894
    %v956 = vmul.f32 %v950, %v895
    %v957 = vmul.f32 %v950, %v896
    %v958 = vadd.f32 %v882, %v951
    %v959 = vadd.f32 %v883, %v952
    %v960 = vadd.f32 %v884, %v953
    %v961 = vadd.f32 %v885, %v954
    %v962 = vadd.f32 %v886, %v955
    %v963 = vadd.f32 %v887, %v956
    %v964 = vadd.f32 %v888, %v957
    %s965 = scalar_lea.vmem [#allocation2], 168
    %v966 = vld [vmem:[%s965] sm:$0xff]
    %v967 = vld [vmem:[%s965 + $0x8] sm:$0xff]
    %v968 = vld [vmem:[%s965 + $0x10] sm:$0xff]
    %v969 = vld [vmem:[%s965 + $0x18] sm:$0xff]
    %v970 = vld [vmem:[%s965 + $0x20] sm:$0xff]
    %v971 = vld [vmem:[%s965 + $0x28] sm:$0xff]
    %v972 = vld [vmem:[%s965 + $0x30] sm:$0xff]
    %s973 = sadd.s32 %s585, 6
    %s974 = sld [smem:[#allocation5 + %s973]]
    %v975 = vstv %s974
    %v976 = vmul.f32 %v975, %v966
    %v977 = vmul.f32 %v975, %v967
    %v978 = vmul.f32 %v975, %v968
    %v979 = vmul.f32 %v975, %v969
    %v980 = vmul.f32 %v975, %v970
    %v981 = vmul.f32 %v975, %v971
    %v982 = vmul.f32 %v975, %v972
    %v983 = vadd.f32 %v907, %v976
    %v984 = vadd.f32 %v908, %v977
    %v985 = vadd.f32 %v909, %v978
    %v986 = vadd.f32 %v910, %v979
    %v987 = vadd.f32 %v911, %v980
    %v988 = vadd.f32 %v912, %v981
    %v989 = vadd.f32 %v913, %v982
    %s990 = sadd.s32 %s624, 6
    %s991 = sld [smem:[#allocation5 + %s990]]
    %v992 = vstv %s991
    %v993 = vmul.f32 %v992, %v966
    %v994 = vmul.f32 %v992, %v967
    %v995 = vmul.f32 %v992, %v968
    %v996 = vmul.f32 %v992, %v969
    %v997 = vmul.f32 %v992, %v970
    %v998 = vmul.f32 %v992, %v971
    %v999 = vmul.f32 %v992, %v972
    %v1000 = vadd.f32 %v924, %v993
    %v1001 = vadd.f32 %v925, %v994
    %v1002 = vadd.f32 %v926, %v995
    %v1003 = vadd.f32 %v927, %v996
    %v1004 = vadd.f32 %v928, %v997
    %v1005 = vadd.f32 %v929, %v998
    %v1006 = vadd.f32 %v930, %v999
    %s1007 = sadd.s32 %s662, 6
    %s1008 = sld [smem:[#allocation5 + %s1007]]
    %v1009 = vstv %s1008
    %v1010 = vmul.f32 %v1009, %v966
    %v1011 = vmul.f32 %v1009, %v967
    %v1012 = vmul.f32 %v1009, %v968
    %v1013 = vmul.f32 %v1009, %v969
    %v1014 = vmul.f32 %v1009, %v970
    %v1015 = vmul.f32 %v1009, %v971
    %v1016 = vmul.f32 %v1009, %v972
    %v1017 = vadd.f32 %v941, %v1010
    %v1018 = vadd.f32 %v942, %v1011
    %v1019 = vadd.f32 %v943, %v1012
    %v1020 = vadd.f32 %v944, %v1013
    %v1021 = vadd.f32 %v945, %v1014
    %v1022 = vadd.f32 %v946, %v1015
    %v1023 = vadd.f32 %v947, %v1016
    %s1024 = sadd.s32 %s701, 6
    %s1025 = sld [smem:[#allocation5 + %s1024]]
    %v1026 = vstv %s1025
    %v1027 = vmul.f32 %v1026, %v966
    %v1028 = vmul.f32 %v1026, %v967
    %v1029 = vmul.f32 %v1026, %v968
    %v1030 = vmul.f32 %v1026, %v969
    %v1031 = vmul.f32 %v1026, %v970
    %v1032 = vmul.f32 %v1026, %v971
    %v1033 = vmul.f32 %v1026, %v972
    %v1034 = vadd.f32 %v958, %v1027
    %v1035 = vadd.f32 %v959, %v1028
    %v1036 = vadd.f32 %v960, %v1029
    %v1037 = vadd.f32 %v961, %v1030
    %v1038 = vadd.f32 %v962, %v1031
    %v1039 = vadd.f32 %v963, %v1032
    %v1040 = vadd.f32 %v964, %v1033
    %s1041 = scalar_lea.vmem [#allocation2], 224
    %v1042 = vld [vmem:[%s1041] sm:$0xff]
    %v1043 = vld [vmem:[%s1041 + $0x8] sm:$0xff]
    %v1044 = vld [vmem:[%s1041 + $0x10] sm:$0xff]
    %v1045 = vld [vmem:[%s1041 + $0x18] sm:$0xff]
    %v1046 = vld [vmem:[%s1041 + $0x20] sm:$0xff]
    %v1047 = vld [vmem:[%s1041 + $0x28] sm:$0xff]
    %v1048 = vld [vmem:[%s1041 + $0x30] sm:$0xff]
    %s1049 = sadd.s32 %s585, 7
    %s1050 = sld [smem:[#allocation5 + %s1049]]
    %v1051 = vstv %s1050
    %v1052 = vmul.f32 %v1051, %v1042
    %v1053 = vmul.f32 %v1051, %v1043
    %v1054 = vmul.f32 %v1051, %v1044
    %v1055 = vmul.f32 %v1051, %v1045
    %v1056 = vmul.f32 %v1051, %v1046
    %v1057 = vmul.f32 %v1051, %v1047
    %v1058 = vmul.f32 %v1051, %v1048
    %v1059 = vadd.f32 %v983, %v1052
    %v1060 = vadd.f32 %v984, %v1053
    %v1061 = vadd.f32 %v985, %v1054
    %v1062 = vadd.f32 %v986, %v1055
    %v1063 = vadd.f32 %v987, %v1056
    %v1064 = vadd.f32 %v988, %v1057
    %v1065 = vadd.f32 %v989, %v1058
    %s1066 = sadd.s32 %s624, 7
    %s1067 = sld [smem:[#allocation5 + %s1066]]
    %v1068 = vstv %s1067
    %v1069 = vmul.f32 %v1068, %v1042
    %v1070 = vmul.f32 %v1068, %v1043
    %v1071 = vmul.f32 %v1068, %v1044
    %v1072 = vmul.f32 %v1068, %v1045
    %v1073 = vmul.f32 %v1068, %v1046
    %v1074 = vmul.f32 %v1068, %v1047
    %v1075 = vmul.f32 %v1068, %v1048
    %v1076 = vadd.f32 %v1000, %v1069
    %v1077 = vadd.f32 %v1001, %v1070
    %v1078 = vadd.f32 %v1002, %v1071
    %v1079 = vadd.f32 %v1003, %v1072
    %v1080 = vadd.f32 %v1004, %v1073
    %v1081 = vadd.f32 %v1005, %v1074
    %v1082 = vadd.f32 %v1006, %v1075
    %s1083 = sadd.s32 %s662, 7
    %s1084 = sld [smem:[#allocation5 + %s1083]]
    %v1085 = vstv %s1084
    %v1086 = vmul.f32 %v1085, %v1042
    %v1087 = vmul.f32 %v1085, %v1043
    %v1088 = vmul.f32 %v1085, %v1044
    %v1089 = vmul.f32 %v1085, %v1045
    %v1090 = vmul.f32 %v1085, %v1046
    %v1091 = vmul.f32 %v1085, %v1047
    %v1092 = vmul.f32 %v1085, %v1048
    %v1093 = vadd.f32 %v1017, %v1086
    %v1094 = vadd.f32 %v1018, %v1087
    %v1095 = vadd.f32 %v1019, %v1088
    %v1096 = vadd.f32 %v1020, %v1089
    %v1097 = vadd.f32 %v1021, %v1090
    %v1098 = vadd.f32 %v1022, %v1091
    %v1099 = vadd.f32 %v1023, %v1092
    %s1100 = sadd.s32 %s701, 7
    %s1101 = sld [smem:[#allocation5 + %s1100]]
    %v1102 = vstv %s1101
    %v1103 = vmul.f32 %v1102, %v1042
    %v1104 = vmul.f32 %v1102, %v1043
    %v1105 = vmul.f32 %v1102, %v1044
    %v1106 = vmul.f32 %v1102, %v1045
    %v1107 = vmul.f32 %v1102, %v1046
    %v1108 = vmul.f32 %v1102, %v1047
    %v1109 = vmul.f32 %v1102, %v1048
    %v1110 = vadd.f32 %v1034, %v1103
    %v1111 = vadd.f32 %v1035, %v1104
    %v1112 = vadd.f32 %v1036, %v1105
    %v1113 = vadd.f32 %v1037, %v1106
    %v1114 = vadd.f32 %v1038, %v1107
    %v1115 = vadd.f32 %v1039, %v1108
    %v1116 = vadd.f32 %v1040, %v1109
    %s1117 = scalar_lea.vmem [#allocation2], 280
    %v1118 = vld [vmem:[%s1117] sm:$0xff]
    %v1119 = vld [vmem:[%s1117 + $0x8] sm:$0xff]
    %v1120 = vld [vmem:[%s1117 + $0x10] sm:$0xff]
    %v1121 = vld [vmem:[%s1117 + $0x18] sm:$0xff]
    %v1122 = vld [vmem:[%s1117 + $0x20] sm:$0xff]
    %v1123 = vld [vmem:[%s1117 + $0x28] sm:$0xff]
    %v1124 = vld [vmem:[%s1117 + $0x30] sm:$0xff]
    %s1125 = sadd.s32 %s585, 8
    %s1126 = sld [smem:[#allocation5 + %s1125]]
    %v1127 = vstv %s1126
    %v1128 = vmul.f32 %v1127, %v1118
    %v1129 = vmul.f32 %v1127, %v1119
    %v1130 = vmul.f32 %v1127, %v1120
    %v1131 = vmul.f32 %v1127, %v1121
    %v1132 = vmul.f32 %v1127, %v1122
    %v1133 = vmul.f32 %v1127, %v1123
    %v1134 = vmul.f32 %v1127, %v1124
    %v1135 = vadd.f32 %v1059, %v1128
    %v1136 = vadd.f32 %v1060, %v1129
    %v1137 = vadd.f32 %v1061, %v1130
    %v1138 = vadd.f32 %v1062, %v1131
    %v1139 = vadd.f32 %v1063, %v1132
    %v1140 = vadd.f32 %v1064, %v1133
    %v1141 = vadd.f32 %v1065, %v1134
    %s1142 = sadd.s32 %s624, 8
    %s1143 = sld [smem:[#allocation5 + %s1142]]
    %v1144 = vstv %s1143
    %v1145 = vmul.f32 %v1144, %v1118
    %v1146 = vmul.f32 %v1144, %v1119
    %v1147 = vmul.f32 %v1144, %v1120
    %v1148 = vmul.f32 %v1144, %v1121
    %v1149 = vmul.f32 %v1144, %v1122
    %v1150 = vmul.f32 %v1144, %v1123
    %v1151 = vmul.f32 %v1144, %v1124
    %v1152 = vadd.f32 %v1076, %v1145
    %v1153 = vadd.f32 %v1077, %v1146
    %v1154 = vadd.f32 %v1078, %v1147
    %v1155 = vadd.f32 %v1079, %v1148
    %v1156 = vadd.f32 %v1080, %v1149
    %v1157 = vadd.f32 %v1081, %v1150
    %v1158 = vadd.f32 %v1082, %v1151
    %s1159 = sadd.s32 %s662, 8
    %s1160 = sld [smem:[#allocation5 + %s1159]]
    %v1161 = vstv %s1160
    %v1162 = vmul.f32 %v1161, %v1118
    %v1163 = vmul.f32 %v1161, %v1119
    %v1164 = vmul.f32 %v1161, %v1120
    %v1165 = vmul.f32 %v1161, %v1121
    %v1166 = vmul.f32 %v1161, %v1122
    %v1167 = vmul.f32 %v1161, %v1123
    %v1168 = vmul.f32 %v1161, %v1124
    %v1169 = vadd.f32 %v1093, %v1162
    %v1170 = vadd.f32 %v1094, %v1163
    %v1171 = vadd.f32 %v1095, %v1164
    %v1172 = vadd.f32 %v1096, %v1165
    %v1173 = vadd.f32 %v1097, %v1166
    %v1174 = vadd.f32 %v1098, %v1167
    %v1175 = vadd.f32 %v1099, %v1168
    %s1176 = sadd.s32 %s701, 8
    %s1177 = sld [smem:[#allocation5 + %s1176]]
    %v1178 = vstv %s1177
    %v1179 = vmul.f32 %v1178, %v1118
    %v1180 = vmul.f32 %v1178, %v1119
    %v1181 = vmul.f32 %v1178, %v1120
    %v1182 = vmul.f32 %v1178, %v1121
    %v1183 = vmul.f32 %v1178, %v1122
    %v1184 = vmul.f32 %v1178, %v1123
    %v1185 = vmul.f32 %v1178, %v1124
    %v1186 = vadd.f32 %v1110, %v1179
    %v1187 = vadd.f32 %v1111, %v1180
    %v1188 = vadd.f32 %v1112, %v1181
    %v1189 = vadd.f32 %v1113, %v1182
    %v1190 = vadd.f32 %v1114, %v1183
    %v1191 = vadd.f32 %v1115, %v1184
    %v1192 = vadd.f32 %v1116, %v1185
    %s1193 = scalar_lea.vmem [#allocation2], 336
    %v1194 = vld [vmem:[%s1193] sm:$0xff]
    %v1195 = vld [vmem:[%s1193 + $0x8] sm:$0xff]
    %v1196 = vld [vmem:[%s1193 + $0x10] sm:$0xff]
    %v1197 = vld [vmem:[%s1193 + $0x18] sm:$0xff]
    %v1198 = vld [vmem:[%s1193 + $0x20] sm:$0xff]
    %v1199 = vld [vmem:[%s1193 + $0x28] sm:$0xff]
    %v1200 = vld [vmem:[%s1193 + $0x30] sm:$0xff]
    %s1201 = sadd.s32 %s585, 9
    %s1202 = sld [smem:[#allocation5 + %s1201]]
    %v1203 = vstv %s1202
    %v1204 = vmul.f32 %v1203, %v1194
    %v1205 = vmul.f32 %v1203, %v1195
    %v1206 = vmul.f32 %v1203, %v1196
    %v1207 = vmul.f32 %v1203, %v1197
    %v1208 = vmul.f32 %v1203, %v1198
    %v1209 = vmul.f32 %v1203, %v1199
    %v1210 = vmul.f32 %v1203, %v1200
    %v1211 = vadd.f32 %v1135, %v1204
    %v1212 = vadd.f32 %v1136, %v1205
    %v1213 = vadd.f32 %v1137, %v1206
    %v1214 = vadd.f32 %v1138, %v1207
    %v1215 = vadd.f32 %v1139, %v1208
    %v1216 = vadd.f32 %v1140, %v1209
    %v1217 = vadd.f32 %v1141, %v1210
    %s1218 = sadd.s32 %s624, 9
    %s1219 = sld [smem:[#allocation5 + %s1218]]
    %v1220 = vstv %s1219
    %v1221 = vmul.f32 %v1220, %v1194
    %v1222 = vmul.f32 %v1220, %v1195
    %v1223 = vmul.f32 %v1220, %v1196
    %v1224 = vmul.f32 %v1220, %v1197
    %v1225 = vmul.f32 %v1220, %v1198
    %v1226 = vmul.f32 %v1220, %v1199
    %v1227 = vmul.f32 %v1220, %v1200
    %v1228 = vadd.f32 %v1152, %v1221
    %v1229 = vadd.f32 %v1153, %v1222
    %v1230 = vadd.f32 %v1154, %v1223
    %v1231 = vadd.f32 %v1155, %v1224
    %v1232 = vadd.f32 %v1156, %v1225
    %v1233 = vadd.f32 %v1157, %v1226
    %v1234 = vadd.f32 %v1158, %v1227
    %s1235 = sadd.s32 %s662, 9
    %s1236 = sld [smem:[#allocation5 + %s1235]]
    %v1237 = vstv %s1236
    %v1238 = vmul.f32 %v1237, %v1194
    %v1239 = vmul.f32 %v1237, %v1195
    %v1240 = vmul.f32 %v1237, %v1196
    %v1241 = vmul.f32 %v1237, %v1197
    %v1242 = vmul.f32 %v1237, %v1198
    %v1243 = vmul.f32 %v1237, %v1199
    %v1244 = vmul.f32 %v1237, %v1200
    %v1245 = vadd.f32 %v1169, %v1238
    %v1246 = vadd.f32 %v1170, %v1239
    %v1247 = vadd.f32 %v1171, %v1240
    %v1248 = vadd.f32 %v1172, %v1241
    %v1249 = vadd.f32 %v1173, %v1242
    %v1250 = vadd.f32 %v1174, %v1243
    %v1251 = vadd.f32 %v1175, %v1244
    %s1252 = sadd.s32 %s701, 9
    %s1253 = sld [smem:[#allocation5 + %s1252]]
    %v1254 = vstv %s1253
    %v1255 = vmul.f32 %v1254, %v1194
    %v1256 = vmul.f32 %v1254, %v1195
    %v1257 = vmul.f32 %v1254, %v1196
    %v1258 = vmul.f32 %v1254, %v1197
    %v1259 = vmul.f32 %v1254, %v1198
    %v1260 = vmul.f32 %v1254, %v1199
    %v1261 = vmul.f32 %v1254, %v1200
    %v1262 = vadd.f32 %v1186, %v1255
    %v1263 = vadd.f32 %v1187, %v1256
    %v1264 = vadd.f32 %v1188, %v1257
    %v1265 = vadd.f32 %v1189, %v1258
    %v1266 = vadd.f32 %v1190, %v1259
    %v1267 = vadd.f32 %v1191, %v1260
    %v1268 = vadd.f32 %v1192, %v1261
    %s1269 = scalar_lea.vmem [#allocation2], 392
    %v1270 = vld [vmem:[%s1269] sm:$0xff]
    %v1271 = vld [vmem:[%s1269 + $0x8] sm:$0xff]
    %v1272 = vld [vmem:[%s1269 + $0x10] sm:$0xff]
    %v1273 = vld [vmem:[%s1269 + $0x18] sm:$0xff]
    %v1274 = vld [vmem:[%s1269 + $0x20] sm:$0xff]
    %v1275 = vld [vmem:[%s1269 + $0x28] sm:$0xff]
    %v1276 = vld [vmem:[%s1269 + $0x30] sm:$0xff]
    %s1277 = sadd.s32 %s585, 10
    %s1278 = sld [smem:[#allocation5 + %s1277]]
    %v1279 = vstv %s1278
    %v1280 = vmul.f32 %v1279, %v1270
    %v1281 = vmul.f32 %v1279, %v1271
    %v1282 = vmul.f32 %v1279, %v1272
    %v1283 = vmul.f32 %v1279, %v1273
    %v1284 = vmul.f32 %v1279, %v1274
    %v1285 = vmul.f32 %v1279, %v1275
    %v1286 = vmul.f32 %v1279, %v1276
    %v1287 = vadd.f32 %v1211, %v1280
    %v1288 = vadd.f32 %v1212, %v1281
    %v1289 = vadd.f32 %v1213, %v1282
    %v1290 = vadd.f32 %v1214, %v1283
    %v1291 = vadd.f32 %v1215, %v1284
    %v1292 = vadd.f32 %v1216, %v1285
    %v1293 = vadd.f32 %v1217, %v1286
    %s1294 = sadd.s32 %s624, 10
    %s1295 = sld [smem:[#allocation5 + %s1294]]
    %v1296 = vstv %s1295
    %v1297 = vmul.f32 %v1296, %v1270
    %v1298 = vmul.f32 %v1296, %v1271
    %v1299 = vmul.f32 %v1296, %v1272
    %v1300 = vmul.f32 %v1296, %v1273
    %v1301 = vmul.f32 %v1296, %v1274
    %v1302 = vmul.f32 %v1296, %v1275
    %v1303 = vmul.f32 %v1296, %v1276
    %v1304 = vadd.f32 %v1228, %v1297
    %v1305 = vadd.f32 %v1229, %v1298
    %v1306 = vadd.f32 %v1230, %v1299
    %v1307 = vadd.f32 %v1231, %v1300
    %v1308 = vadd.f32 %v1232, %v1301
    %v1309 = vadd.f32 %v1233, %v1302
    %v1310 = vadd.f32 %v1234, %v1303
    %s1311 = sadd.s32 %s662, 10
    %s1312 = sld [smem:[#allocation5 + %s1311]]
    %v1313 = vstv %s1312
    %v1314 = vmul.f32 %v1313, %v1270
    %v1315 = vmul.f32 %v1313, %v1271
    %v1316 = vmul.f32 %v1313, %v1272
    %v1317 = vmul.f32 %v1313, %v1273
    %v1318 = vmul.f32 %v1313, %v1274
    %v1319 = vmul.f32 %v1313, %v1275
    %v1320 = vmul.f32 %v1313, %v1276
    %v1321 = vadd.f32 %v1245, %v1314
    %v1322 = vadd.f32 %v1246, %v1315
    %v1323 = vadd.f32 %v1247, %v1316
    %v1324 = vadd.f32 %v1248, %v1317
    %v1325 = vadd.f32 %v1249, %v1318
    %v1326 = vadd.f32 %v1250, %v1319
    %v1327 = vadd.f32 %v1251, %v1320
    %s1328 = sadd.s32 %s701, 10
    %s1329 = sld [smem:[#allocation5 + %s1328]]
    %v1330 = vstv %s1329
    %v1331 = vmul.f32 %v1330, %v1270
    %v1332 = vmul.f32 %v1330, %v1271
    %v1333 = vmul.f32 %v1330, %v1272
    %v1334 = vmul.f32 %v1330, %v1273
    %v1335 = vmul.f32 %v1330, %v1274
    %v1336 = vmul.f32 %v1330, %v1275
    %v1337 = vmul.f32 %v1330, %v1276
    %v1338 = vadd.f32 %v1262, %v1331
    %v1339 = vadd.f32 %v1263, %v1332
    %v1340 = vadd.f32 %v1264, %v1333
    %v1341 = vadd.f32 %v1265, %v1334
    %v1342 = vadd.f32 %v1266, %v1335
    %v1343 = vadd.f32 %v1267, %v1336
    %v1344 = vadd.f32 %v1268, %v1337
    %s1345 = scalar_lea.vmem [#allocation2], 448
    %v1346 = vld [vmem:[%s1345] sm:$0xff]
    %v1347 = vld [vmem:[%s1345 + $0x8] sm:$0xff]
    %v1348 = vld [vmem:[%s1345 + $0x10] sm:$0xff]
    %v1349 = vld [vmem:[%s1345 + $0x18] sm:$0xff]
    %v1350 = vld [vmem:[%s1345 + $0x20] sm:$0xff]
    %v1351 = vld [vmem:[%s1345 + $0x28] sm:$0xff]
    %v1352 = vld [vmem:[%s1345 + $0x30] sm:$0xff]
    %s1353 = sadd.s32 %s585, 11
    %s1354 = sld [smem:[#allocation5 + %s1353]]
    %v1355 = vstv %s1354
    %v1356 = vmul.f32 %v1355, %v1346
    %v1357 = vmul.f32 %v1355, %v1347
    %v1358 = vmul.f32 %v1355, %v1348
    %v1359 = vmul.f32 %v1355, %v1349
    %v1360 = vmul.f32 %v1355, %v1350
    %v1361 = vmul.f32 %v1355, %v1351
    %v1362 = vmul.f32 %v1355, %v1352
    %v1363 = vadd.f32 %v1287, %v1356
    %v1364 = vadd.f32 %v1288, %v1357
    %v1365 = vadd.f32 %v1289, %v1358
    %v1366 = vadd.f32 %v1290, %v1359
    %v1367 = vadd.f32 %v1291, %v1360
    %v1368 = vadd.f32 %v1292, %v1361
    %v1369 = vadd.f32 %v1293, %v1362
    %s1370 = sadd.s32 %s624, 11
    %s1371 = sld [smem:[#allocation5 + %s1370]]
    %v1372 = vstv %s1371
    %v1373 = vmul.f32 %v1372, %v1346
    %v1374 = vmul.f32 %v1372, %v1347
    %v1375 = vmul.f32 %v1372, %v1348
    %v1376 = vmul.f32 %v1372, %v1349
    %v1377 = vmul.f32 %v1372, %v1350
    %v1378 = vmul.f32 %v1372, %v1351
    %v1379 = vmul.f32 %v1372, %v1352
    %v1380 = vadd.f32 %v1304, %v1373
    %v1381 = vadd.f32 %v1305, %v1374
    %v1382 = vadd.f32 %v1306, %v1375
    %v1383 = vadd.f32 %v1307, %v1376
    %v1384 = vadd.f32 %v1308, %v1377
    %v1385 = vadd.f32 %v1309, %v1378
    %v1386 = vadd.f32 %v1310, %v1379
    %s1387 = sadd.s32 %s662, 11
    %s1388 = sld [smem:[#allocation5 + %s1387]]
    %v1389 = vstv %s1388
    %v1390 = vmul.f32 %v1389, %v1346
    %v1391 = vmul.f32 %v1389, %v1347
    %v1392 = vmul.f32 %v1389, %v1348
    %v1393 = vmul.f32 %v1389, %v1349
    %v1394 = vmul.f32 %v1389, %v1350
    %v1395 = vmul.f32 %v1389, %v1351
    %v1396 = vmul.f32 %v1389, %v1352
    %v1397 = vadd.f32 %v1321, %v1390
    %v1398 = vadd.f32 %v1322, %v1391
    %v1399 = vadd.f32 %v1323, %v1392
    %v1400 = vadd.f32 %v1324, %v1393
    %v1401 = vadd.f32 %v1325, %v1394
    %v1402 = vadd.f32 %v1326, %v1395
    %v1403 = vadd.f32 %v1327, %v1396
    %s1404 = sadd.s32 %s701, 11
    %s1405 = sld [smem:[#allocation5 + %s1404]]
    %v1406 = vstv %s1405
    %v1407 = vmul.f32 %v1406, %v1346
    %v1408 = vmul.f32 %v1406, %v1347
    %v1409 = vmul.f32 %v1406, %v1348
    %v1410 = vmul.f32 %v1406, %v1349
    %v1411 = vmul.f32 %v1406, %v1350
    %v1412 = vmul.f32 %v1406, %v1351
    %v1413 = vmul.f32 %v1406, %v1352
    %v1414 = vadd.f32 %v1338, %v1407
    %v1415 = vadd.f32 %v1339, %v1408
    %v1416 = vadd.f32 %v1340, %v1409
    %v1417 = vadd.f32 %v1341, %v1410
    %v1418 = vadd.f32 %v1342, %v1411
    %v1419 = vadd.f32 %v1343, %v1412
    %v1420 = vadd.f32 %v1344, %v1413
    %1421 = vst [vmem:[#allocation8] sm:$0xff] %v1363
    %1422 = vst [vmem:[#allocation8 + $0x8] sm:$0xff] %v1364
    %1423 = vst [vmem:[#allocation8 + $0x10] sm:$0xff] %v1365
    %1424 = vst [vmem:[#allocation8 + $0x18] sm:$0xff] %v1366
    %1425 = vst [vmem:[#allocation8 + $0x20] sm:$0xff] %v1367
    %1426 = vst [vmem:[#allocation8 + $0x28] sm:$0xff] %v1368
    %1427 = vst [vmem:[#allocation8 + $0x30] sm:$0xff] %v1369
    %s1428 = scalar_lea.vmem [#allocation8], 56
    %1429 = vst [vmem:[%s1428] sm:$0xff] %v1380
    %1430 = vst [vmem:[%s1428 + $0x8] sm:$0xff] %v1381
    %1431 = vst [vmem:[%s1428 + $0x10] sm:$0xff] %v1382
    %1432 = vst [vmem:[%s1428 + $0x18] sm:$0xff] %v1383
    %1433 = vst [vmem:[%s1428 + $0x20] sm:$0xff] %v1384
    %1434 = vst [vmem:[%s1428 + $0x28] sm:$0xff] %v1385
    %1435 = vst [vmem:[%s1428 + $0x30] sm:$0xff] %v1386
    %s1436 = scalar_lea.vmem [#allocation8], 112
    %1437 = vst [vmem:[%s1436] sm:$0xff] %v1397
    %1438 = vst [vmem:[%s1436 + $0x8] sm:$0xff] %v1398
    %1439 = vst [vmem:[%s1436 + $0x10] sm:$0xff] %v1399
    %1440 = vst [vmem:[%s1436 + $0x18] sm:$0xff] %v1400
    %1441 = vst [vmem:[%s1436 + $0x20] sm:$0xff] %v1401
    %1442 = vst [vmem:[%s1436 + $0x28] sm:$0xff] %v1402
    %1443 = vst [vmem:[%s1436 + $0x30] sm:$0xff] %v1403
    %s1444 = scalar_lea.vmem [#allocation8], 168
    %1445 = vst [vmem:[%s1444] sm:$0xff] %v1414
    %1446 = vst [vmem:[%s1444 + $0x8] sm:$0xff] %v1415
    %1447 = vst [vmem:[%s1444 + $0x10] sm:$0xff] %v1416
    %1448 = vst [vmem:[%s1444 + $0x18] sm:$0xff] %v1417
    %1449 = vst [vmem:[%s1444 + $0x20] sm:$0xff] %v1418
    %1450 = vst [vmem:[%s1444 + $0x28] sm:$0xff] %v1419
    %1451 = vst [vmem:[%s1444 + $0x30] sm:$0xff] %v1420
    // Predicated region
    $region14: #{tpu_custom_call.1} parent=1 // pred_check
      _
    $region15: #{tpu_custom_call.1} parent=1 // pred_check_branch
      %1453 = sbr.rel (0) target = $region17
    $region16: #{tpu_custom_call.1} parent=1 // pred_region
      %s1455 = ssub.s32 3584, 3584
      %1456 = vsyncadd [#allocation6], %s1455
      %s1457 = sshll.u32 [#allocation8], 4
      %s1458 = int_to_ptr.vmem [resolvable:$true] %s1457
      %1463 = dma.vmem_to_hbm [thread:$0]  %s1458, 3584, %s1, [#allocation6], 128, 128, 8
    $region17: #{tpu_custom_call.1} parent=1 // pred_fallthru
      _
    // Predicated region
    $region18: #{tpu_custom_call.1} parent=1 // pred_check
      _
    $region19: #{tpu_custom_call.1} parent=1 // pred_check_branch
      %1465 = sbr.rel (0) target = $region21
    $region20: #{tpu_custom_call.1} parent=1 // pred_region
      %1466 = dma.done [#allocation6], 3584
    $region21: #{tpu_custom_call.1} parent=1 // pred_fallthru
      _
    %1467 = vsyncpa [#allocation6], 1
    %1468 = vsyncpa [#allocation7], 1

</llo_original>
